<compile_context>
chip_gen: v7x
topology: tpu7x:2x2x1
jax: 0.10.0
libtpu: 0.0.40
codegen_flags: <defaults>
</compile_context>

<pallas_src>
import jax
import jax.numpy as jnp
from jax.experimental import pallas as pl
from jax.experimental.pallas import tpu as pltpu

EMBED_DIM = 128
N_HEADS = 4
HEAD_SIZE = EMBED_DIM // N_HEADS  # 32


# TODO(synk): nn.Dropout (p=0.2) in train mode is not implemented; the kernel
# matches eval/inference semantics (dropout = identity).
def mha_kernel(x_ref, wq_ref, wk_ref, wv_ref, wproj_ref, bproj_ref, o_ref):
    Bt, T, D = x_ref.shape
    mxu_dt = wq_ref.dtype                      # bf16 (or f32) MXU operand dtype

    # Flatten rows so QKV / projection matmuls see M = Bt*T.
    x2d = x_ref[...].reshape(Bt * T, D)
    xm = x2d.astype(mxu_dt)

    q = jnp.dot(xm, wq_ref[...], preferred_element_type=jnp.float32)  # (Bt*T, D)
    k = jnp.dot(xm, wk_ref[...], preferred_element_type=jnp.float32)
    v = jnp.dot(xm, wv_ref[...], preferred_element_type=jnp.float32)
    q16 = q.astype(mxu_dt)
    k16 = k.astype(mxu_dt)
    v16 = v.astype(mxu_dt)

    # Causal mask built once (hoisted), applied as an additive 0 / -inf bias.
    row = jax.lax.broadcasted_iota(jnp.int32, (T, T), 0)
    col = jax.lax.broadcasted_iota(jnp.int32, (T, T), 1)
    mask_bias = jnp.where(col <= row, jnp.float32(0.0), jnp.float32(-jnp.inf))

    scale = jnp.float32(HEAD_SIZE ** (-0.5))
    wproj = wproj_ref[...]                     # (D, D) in MXU dtype

    row_blocks = []
    for b in range(Bt):                        # static, small
        rs = slice(b * T, (b + 1) * T)
        acc = jnp.zeros((T, D), jnp.float32)   # fused concat(heads) @ Wproj
        for h in range(N_HEADS):               # static
            cs = slice(h * HEAD_SIZE, (h + 1) * HEAD_SIZE)
            qh = q16[rs, cs]                   # (T, hs)
            kh = k16[rs, cs]
            vh = v16[rs, cs]

            s = jnp.dot(qh, kh.T, preferred_element_type=jnp.float32)
            s = s * scale + mask_bias          # causal mask
            s = s - jnp.max(s, axis=-1, keepdims=True)
            e = jnp.exp(s)
            p = e * pl.reciprocal(jnp.sum(e, axis=-1, keepdims=True), approx=True)

            oh = jnp.dot(p.astype(mxu_dt), vh, preferred_element_type=jnp.float32)
            # concat(head outputs) @ Wproj == sum_h out_h @ Wproj[h-slice, :]
            acc = acc + jnp.dot(oh.astype(mxu_dt), wproj[cs, :],
                                preferred_element_type=jnp.float32)
        row_blocks.append(acc)

    y = row_blocks[0] if Bt == 1 else jnp.concatenate(row_blocks, axis=0)
    y = y + bproj_ref[...]                     # (1, D) broadcasts over rows
    # One lane-dense (Bt, T, 128) store.
    o_ref[...] = y.reshape(Bt, T, D).astype(o_ref.dtype)


def mha_forward(x, params, *, batch_block=None, mxu_dtype=jnp.bfloat16):
    """x: (B, T, D) float32. params: dict of pre-transposed (in, out) weights."""
    B, T, D = x.shape
    assert D == EMBED_DIM

    # Default batch block: fatten M but keep >= 2 grid steps when B >= 2
    # (v7x has 2 TensorCores).
    if batch_block is None:
        batch_block = min(8, max(1, B // 4))
    batch_block = max(1, min(batch_block, B))
    while B % batch_block:
        batch_block -= 1
    grid = (B // batch_block,)

    # Weights cast once to the MXU operand dtype (bf16-in / f32-accumulate);
    # halves weight DMA + VMEM residency.  Bias stays f32 (added post-acc).
    wq = params["wq"].astype(mxu_dtype)
    wk = params["wk"].astype(mxu_dtype)
    wv = params["wv"].astype(mxu_dtype)
    wproj = params["wproj"].astype(mxu_dtype)
    bproj = params["bproj"].astype(jnp.float32)

    wspec = pl.BlockSpec((D, D), lambda b: (0, 0))
    return pl.pallas_call(
        mha_kernel,
        out_shape=jax.ShapeDtypeStruct((B, T, D), x.dtype),
        grid_spec=pltpu.PrefetchScalarGridSpec(
            num_scalar_prefetch=0,
            grid=grid,
            in_specs=[
                pl.BlockSpec((batch_block, T, D), lambda b: (b, 0, 0)),
                wspec, wspec, wspec, wspec,
                pl.BlockSpec((1, D), lambda b: (0, 0)),
            ],
            out_specs=pl.BlockSpec((batch_block, T, D), lambda b: (b, 0, 0)),
        ),
        compiler_params=pltpu.CompilerParams(
            dimension_semantics=("parallel",)),
    )(x, wq, wk, wv, wproj, bproj)


def reference_forward(x, p):
    """Pure-JAX f32 reference of MultiHeadAttention.forward (eval mode)."""
    B, T, D = x.shape
    q = x @ p["wq"]
    k = x @ p["wk"]
    v = x @ p["wv"]
    mask = jnp.tril(jnp.ones((T, T), bool))
    outs = []
    for h in range(N_HEADS):
        sl = slice(h * HEAD_SIZE, (h + 1) * HEAD_SIZE)
        s = q[..., sl] @ jnp.swapaxes(k[..., sl], -1, -2) * HEAD_SIZE ** (-0.5)
        s = jnp.where(mask, s, -jnp.inf)
        outs.append(jax.nn.softmax(s, -1) @ v[..., sl])
    att = jnp.concatenate(outs, -1)
    return att @ p["wproj"] + p["bproj"][0]


def init_params(key):
    ks = jax.random.split(key, 5)
    D = EMBED_DIM
    sc = 0.02
    return {
        "wq": sc * jax.random.normal(ks[0], (D, D), jnp.float32),
        "wk": sc * jax.random.normal(ks[1], (D, D), jnp.float32),
        "wv": sc * jax.random.normal(ks[2], (D, D), jnp.float32),
        "wproj": sc * jax.random.normal(ks[3], (D, D), jnp.float32),
        "bproj": sc * jax.random.normal(ks[4], (1, D), jnp.float32),
    }


if __name__ == "__main__":
    key = jax.random.PRNGKey(0)
    kx, kp = jax.random.split(key)
    B, T = 2, 8                      # small seq (<= block_size=256), D fixed at 128
    x = jax.random.normal(kx, (B, T, EMBED_DIM), jnp.float32)
    params = init_params(kp)

    out = jax.block_until_ready(mha_forward(x, params))
    ref = reference_forward(x, params)

    assert out.shape == (B, T, EMBED_DIM)
    # bf16 MXU operands with f32 accumulation -> relaxed tolerance vs f32 ref.
    assert jnp.allclose(out, ref, atol=1e-2, rtol=1e-2), "mismatch vs reference"
    print("KERNEL_OK")
</pallas_src>

<mosaic_0001>
module attributes {stable_mosaic.version = 11 : i64} {
  func.func @mha_kernel(%arg0: i32, %arg1: memref<1x8x128xf32, #tpu.memory_space<vmem>>, %arg2: memref<128x128xbf16, #tpu.memory_space<vmem>>, %arg3: memref<128x128xbf16, #tpu.memory_space<vmem>>, %arg4: memref<128x128xbf16, #tpu.memory_space<vmem>>, %arg5: memref<128x128xbf16, #tpu.memory_space<vmem>>, %arg6: memref<1x128xf32, #tpu.memory_space<vmem>>, %arg7: memref<1x8x128xf32, #tpu.memory_space<vmem>>) attributes {dimension_semantics = [#tpu.dimension_semantics<parallel>], iteration_bounds = array<i64: 2>, scalar_prefetch = 0 : i64, scratch_operands = 0 : i64, tpu.core_type = #tpu.core_type<tc>, window_params = [{transform_indices = @transform_0, window_bounds = array<i64: 1, 8, 128>}, {pipeline_mode = #tpu.pipeline_mode<synchronous>, transform_indices = @transform_1, window_bounds = array<i64: 128, 128>}, {pipeline_mode = #tpu.pipeline_mode<synchronous>, transform_indices = @transform_2, window_bounds = array<i64: 128, 128>}, {pipeline_mode = #tpu.pipeline_mode<synchronous>, transform_indices = @transform_3, window_bounds = array<i64: 128, 128>}, {pipeline_mode = #tpu.pipeline_mode<synchronous>, transform_indices = @transform_4, window_bounds = array<i64: 128, 128>}, {pipeline_mode = #tpu.pipeline_mode<synchronous>, transform_indices = @transform_5, window_bounds = array<i64: 1, 128>}, {transform_indices = @transform_6, window_bounds = array<i64: 1, 8, 128>}]} {
    %c0 = arith.constant 0 : index
    %c0_0 = arith.constant 0 : index
    %c0_1 = arith.constant 0 : index
    %0 = vector.load %arg1[%c0, %c0_0, %c0_1] : memref<1x8x128xf32, #tpu.memory_space<vmem>>, vector<1x8x128xf32>
    %1 = vector.shape_cast %0 : vector<1x8x128xf32> to vector<8x128xf32>
    %2 = arith.truncf %1 : vector<8x128xf32> to vector<8x128xbf16>
    %c0_2 = arith.constant 0 : index
    %c0_3 = arith.constant 0 : index
    %3 = vector.load %arg2[%c0_2, %c0_3] : memref<128x128xbf16, #tpu.memory_space<vmem>>, vector<128x128xbf16>
    %cst = arith.constant dense<0.000000e+00> : vector<8x128xf32>
    %4 = tpu.matmul %2, %3, %cst {dimension_numbers = #tpu.dot_dimension_numbers<[1], [0], [0], [1], [0, 0, 1, 1], [], []>} : vector<8x128xbf16>, vector<128x128xbf16>, vector<8x128xf32> -> vector<8x128xf32>
    %c0_4 = arith.constant 0 : index
    %c0_5 = arith.constant 0 : index
    %5 = vector.load %arg3[%c0_4, %c0_5] : memref<128x128xbf16, #tpu.memory_space<vmem>>, vector<128x128xbf16>
    %cst_6 = arith.constant dense<0.000000e+00> : vector<8x128xf32>
    %6 = tpu.matmul %2, %5, %cst_6 {dimension_numbers = #tpu.dot_dimension_numbers<[1], [0], [0], [1], [0, 0, 1, 1], [], []>} : vector<8x128xbf16>, vector<128x128xbf16>, vector<8x128xf32> -> vector<8x128xf32>
    %c0_7 = arith.constant 0 : index
    %c0_8 = arith.constant 0 : index
    %7 = vector.load %arg4[%c0_7, %c0_8] : memref<128x128xbf16, #tpu.memory_space<vmem>>, vector<128x128xbf16>
    %cst_9 = arith.constant dense<0.000000e+00> : vector<8x128xf32>
    %8 = tpu.matmul %2, %7, %cst_9 {dimension_numbers = #tpu.dot_dimension_numbers<[1], [0], [0], [1], [0, 0, 1, 1], [], []>} : vector<8x128xbf16>, vector<128x128xbf16>, vector<8x128xf32> -> vector<8x128xf32>
    %9 = arith.truncf %4 : vector<8x128xf32> to vector<8x128xbf16>
    %10 = arith.truncf %6 : vector<8x128xf32> to vector<8x128xbf16>
    %11 = arith.truncf %8 : vector<8x128xf32> to vector<8x128xbf16>
    %12 = tpu.iota {dimensions = array<i32: 0>} : vector<8x8xi32>
    %13 = tpu.iota {dimensions = array<i32: 1>} : vector<8x8xi32>
    %14 = arith.cmpi sle, %13, %12 : vector<8x8xi32>
    %cst_10 = arith.constant 0.000000e+00 : f32
    %cst_11 = arith.constant 0xFF800000 : f32
    %15 = vector.broadcast %cst_10 : f32 to vector<8x8xf32>
    %16 = vector.broadcast %cst_11 : f32 to vector<8x8xf32>
    %17 = arith.select %14, %15, %16 : vector<8x8xi1>, vector<8x8xf32>
    %c0_12 = arith.constant 0 : index
    %c0_13 = arith.constant 0 : index
    %18 = vector.load %arg5[%c0_12, %c0_13] : memref<128x128xbf16, #tpu.memory_space<vmem>>, vector<128x128xbf16>
    %cst_14 = arith.constant 0.000000e+00 : f32
    %19 = vector.broadcast %cst_14 : f32 to vector<8x128xf32>
    %20 = vector.extract_strided_slice %9 {offsets = [0, 0], sizes = [8, 32], strides = [1, 1]} : vector<8x128xbf16> to vector<8x32xbf16>
    %21 = vector.extract_strided_slice %10 {offsets = [0, 0], sizes = [8, 32], strides = [1, 1]} : vector<8x128xbf16> to vector<8x32xbf16>
    %22 = vector.extract_strided_slice %11 {offsets = [0, 0], sizes = [8, 32], strides = [1, 1]} : vector<8x128xbf16> to vector<8x32xbf16>
    %23 = tpu.transpose %21, [1, 0] : vector<8x32xbf16> -> vector<32x8xbf16>
    %cst_15 = arith.constant dense<0.000000e+00> : vector<8x8xf32>
    %24 = tpu.matmul %20, %23, %cst_15 {dimension_numbers = #tpu.dot_dimension_numbers<[1], [0], [0], [1], [0, 0, 1, 1], [], []>} : vector<8x32xbf16>, vector<32x8xbf16>, vector<8x8xf32> -> vector<8x8xf32>
    %cst_16 = arith.constant 0.176776692 : f32
    %25 = vector.broadcast %cst_16 : f32 to vector<8x8xf32>
    %26 = arith.mulf %24, %25 : vector<8x8xf32>
    %27 = arith.addf %26, %17 : vector<8x8xf32>
    %cst_17 = arith.constant dense<0xFF800000> : vector<8xf32>
    %28 = vector.multi_reduction <maximumf>, %27, %cst_17 [1] : vector<8x8xf32> to vector<8xf32>
    %29 = vector.shape_cast %28 : vector<8xf32> to vector<8x1xf32>
    %30 = vector.broadcast %29 : vector<8x1xf32> to vector<8x8xf32>
    %31 = arith.subf %27, %30 : vector<8x8xf32>
    %32 = math.exp %31 : vector<8x8xf32>
    %cst_18 = arith.constant dense<0.000000e+00> : vector<8xf32>
    %33 = vector.multi_reduction <add>, %32, %cst_18 [1] : vector<8x8xf32> to vector<8xf32>
    %34 = vector.shape_cast %33 : vector<8xf32> to vector<8x1xf32>
    %35 = tpu.reciprocal %34 {approx = true} : vector<8x1xf32> -> vector<8x1xf32>
    %36 = vector.broadcast %35 : vector<8x1xf32> to vector<8x8xf32>
    %37 = arith.mulf %32, %36 : vector<8x8xf32>
    %38 = arith.truncf %37 : vector<8x8xf32> to vector<8x8xbf16>
    %cst_19 = arith.constant dense<0.000000e+00> : vector<8x32xf32>
    %39 = tpu.matmul %38, %22, %cst_19 {dimension_numbers = #tpu.dot_dimension_numbers<[1], [0], [0], [1], [0, 0, 1, 1], [], []>} : vector<8x8xbf16>, vector<8x32xbf16>, vector<8x32xf32> -> vector<8x32xf32>
    %40 = arith.truncf %39 : vector<8x32xf32> to vector<8x32xbf16>
    %41 = vector.extract_strided_slice %18 {offsets = [0, 0], sizes = [32, 128], strides = [1, 1]} : vector<128x128xbf16> to vector<32x128xbf16>
    %cst_20 = arith.constant dense<0.000000e+00> : vector<8x128xf32>
    %42 = tpu.matmul %40, %41, %cst_20 {dimension_numbers = #tpu.dot_dimension_numbers<[1], [0], [0], [1], [0, 0, 1, 1], [], []>} : vector<8x32xbf16>, vector<32x128xbf16>, vector<8x128xf32> -> vector<8x128xf32>
    %43 = arith.addf %19, %42 : vector<8x128xf32>
    %44 = vector.extract_strided_slice %9 {offsets = [0, 32], sizes = [8, 32], strides = [1, 1]} : vector<8x128xbf16> to vector<8x32xbf16>
    %45 = vector.extract_strided_slice %10 {offsets = [0, 32], sizes = [8, 32], strides = [1, 1]} : vector<8x128xbf16> to vector<8x32xbf16>
    %46 = vector.extract_strided_slice %11 {offsets = [0, 32], sizes = [8, 32], strides = [1, 1]} : vector<8x128xbf16> to vector<8x32xbf16>
    %47 = tpu.transpose %45, [1, 0] : vector<8x32xbf16> -> vector<32x8xbf16>
    %cst_21 = arith.constant dense<0.000000e+00> : vector<8x8xf32>
    %48 = tpu.matmul %44, %47, %cst_21 {dimension_numbers = #tpu.dot_dimension_numbers<[1], [0], [0], [1], [0, 0, 1, 1], [], []>} : vector<8x32xbf16>, vector<32x8xbf16>, vector<8x8xf32> -> vector<8x8xf32>
    %cst_22 = arith.constant 0.176776692 : f32
    %49 = vector.broadcast %cst_22 : f32 to vector<8x8xf32>
    %50 = arith.mulf %48, %49 : vector<8x8xf32>
    %51 = arith.addf %50, %17 : vector<8x8xf32>
    %cst_23 = arith.constant dense<0xFF800000> : vector<8xf32>
    %52 = vector.multi_reduction <maximumf>, %51, %cst_23 [1] : vector<8x8xf32> to vector<8xf32>
    %53 = vector.shape_cast %52 : vector<8xf32> to vector<8x1xf32>
    %54 = vector.broadcast %53 : vector<8x1xf32> to vector<8x8xf32>
    %55 = arith.subf %51, %54 : vector<8x8xf32>
    %56 = math.exp %55 : vector<8x8xf32>
    %cst_24 = arith.constant dense<0.000000e+00> : vector<8xf32>
    %57 = vector.multi_reduction <add>, %56, %cst_24 [1] : vector<8x8xf32> to vector<8xf32>
    %58 = vector.shape_cast %57 : vector<8xf32> to vector<8x1xf32>
    %59 = tpu.reciprocal %58 {approx = true} : vector<8x1xf32> -> vector<8x1xf32>
    %60 = vector.broadcast %59 : vector<8x1xf32> to vector<8x8xf32>
    %61 = arith.mulf %56, %60 : vector<8x8xf32>
    %62 = arith.truncf %61 : vector<8x8xf32> to vector<8x8xbf16>
    %cst_25 = arith.constant dense<0.000000e+00> : vector<8x32xf32>
    %63 = tpu.matmul %62, %46, %cst_25 {dimension_numbers = #tpu.dot_dimension_numbers<[1], [0], [0], [1], [0, 0, 1, 1], [], []>} : vector<8x8xbf16>, vector<8x32xbf16>, vector<8x32xf32> -> vector<8x32xf32>
    %64 = arith.truncf %63 : vector<8x32xf32> to vector<8x32xbf16>
    %65 = vector.extract_strided_slice %18 {offsets = [32, 0], sizes = [32, 128], strides = [1, 1]} : vector<128x128xbf16> to vector<32x128xbf16>
    %cst_26 = arith.constant dense<0.000000e+00> : vector<8x128xf32>
    %66 = tpu.matmul %64, %65, %cst_26 {dimension_numbers = #tpu.dot_dimension_numbers<[1], [0], [0], [1], [0, 0, 1, 1], [], []>} : vector<8x32xbf16>, vector<32x128xbf16>, vector<8x128xf32> -> vector<8x128xf32>
    %67 = arith.addf %43, %66 : vector<8x128xf32>
    %68 = vector.extract_strided_slice %9 {offsets = [0, 64], sizes = [8, 32], strides = [1, 1]} : vector<8x128xbf16> to vector<8x32xbf16>
    %69 = vector.extract_strided_slice %10 {offsets = [0, 64], sizes = [8, 32], strides = [1, 1]} : vector<8x128xbf16> to vector<8x32xbf16>
    %70 = vector.extract_strided_slice %11 {offsets = [0, 64], sizes = [8, 32], strides = [1, 1]} : vector<8x128xbf16> to vector<8x32xbf16>
    %71 = tpu.transpose %69, [1, 0] : vector<8x32xbf16> -> vector<32x8xbf16>
    %cst_27 = arith.constant dense<0.000000e+00> : vector<8x8xf32>
    %72 = tpu.matmul %68, %71, %cst_27 {dimension_numbers = #tpu.dot_dimension_numbers<[1], [0], [0], [1], [0, 0, 1, 1], [], []>} : vector<8x32xbf16>, vector<32x8xbf16>, vector<8x8xf32> -> vector<8x8xf32>
    %cst_28 = arith.constant 0.176776692 : f32
    %73 = vector.broadcast %cst_28 : f32 to vector<8x8xf32>
    %74 = arith.mulf %72, %73 : vector<8x8xf32>
    %75 = arith.addf %74, %17 : vector<8x8xf32>
    %cst_29 = arith.constant dense<0xFF800000> : vector<8xf32>
    %76 = vector.multi_reduction <maximumf>, %75, %cst_29 [1] : vector<8x8xf32> to vector<8xf32>
    %77 = vector.shape_cast %76 : vector<8xf32> to vector<8x1xf32>
    %78 = vector.broadcast %77 : vector<8x1xf32> to vector<8x8xf32>
    %79 = arith.subf %75, %78 : vector<8x8xf32>
    %80 = math.exp %79 : vector<8x8xf32>
    %cst_30 = arith.constant dense<0.000000e+00> : vector<8xf32>
    %81 = vector.multi_reduction <add>, %80, %cst_30 [1] : vector<8x8xf32> to vector<8xf32>
    %82 = vector.shape_cast %81 : vector<8xf32> to vector<8x1xf32>
    %83 = tpu.reciprocal %82 {approx = true} : vector<8x1xf32> -> vector<8x1xf32>
    %84 = vector.broadcast %83 : vector<8x1xf32> to vector<8x8xf32>
    %85 = arith.mulf %80, %84 : vector<8x8xf32>
    %86 = arith.truncf %85 : vector<8x8xf32> to vector<8x8xbf16>
    %cst_31 = arith.constant dense<0.000000e+00> : vector<8x32xf32>
    %87 = tpu.matmul %86, %70, %cst_31 {dimension_numbers = #tpu.dot_dimension_numbers<[1], [0], [0], [1], [0, 0, 1, 1], [], []>} : vector<8x8xbf16>, vector<8x32xbf16>, vector<8x32xf32> -> vector<8x32xf32>
    %88 = arith.truncf %87 : vector<8x32xf32> to vector<8x32xbf16>
    %89 = vector.extract_strided_slice %18 {offsets = [64, 0], sizes = [32, 128], strides = [1, 1]} : vector<128x128xbf16> to vector<32x128xbf16>
    %cst_32 = arith.constant dense<0.000000e+00> : vector<8x128xf32>
    %90 = tpu.matmul %88, %89, %cst_32 {dimension_numbers = #tpu.dot_dimension_numbers<[1], [0], [0], [1], [0, 0, 1, 1], [], []>} : vector<8x32xbf16>, vector<32x128xbf16>, vector<8x128xf32> -> vector<8x128xf32>
    %91 = arith.addf %67, %90 : vector<8x128xf32>
    %92 = vector.extract_strided_slice %9 {offsets = [0, 96], sizes = [8, 32], strides = [1, 1]} : vector<8x128xbf16> to vector<8x32xbf16>
    %93 = vector.extract_strided_slice %10 {offsets = [0, 96], sizes = [8, 32], strides = [1, 1]} : vector<8x128xbf16> to vector<8x32xbf16>
    %94 = vector.extract_strided_slice %11 {offsets = [0, 96], sizes = [8, 32], strides = [1, 1]} : vector<8x128xbf16> to vector<8x32xbf16>
    %95 = tpu.transpose %93, [1, 0] : vector<8x32xbf16> -> vector<32x8xbf16>
    %cst_33 = arith.constant dense<0.000000e+00> : vector<8x8xf32>
    %96 = tpu.matmul %92, %95, %cst_33 {dimension_numbers = #tpu.dot_dimension_numbers<[1], [0], [0], [1], [0, 0, 1, 1], [], []>} : vector<8x32xbf16>, vector<32x8xbf16>, vector<8x8xf32> -> vector<8x8xf32>
    %cst_34 = arith.constant 0.176776692 : f32
    %97 = vector.broadcast %cst_34 : f32 to vector<8x8xf32>
    %98 = arith.mulf %96, %97 : vector<8x8xf32>
    %99 = arith.addf %98, %17 : vector<8x8xf32>
    %cst_35 = arith.constant dense<0xFF800000> : vector<8xf32>
    %100 = vector.multi_reduction <maximumf>, %99, %cst_35 [1] : vector<8x8xf32> to vector<8xf32>
    %101 = vector.shape_cast %100 : vector<8xf32> to vector<8x1xf32>
    %102 = vector.broadcast %101 : vector<8x1xf32> to vector<8x8xf32>
    %103 = arith.subf %99, %102 : vector<8x8xf32>
    %104 = math.exp %103 : vector<8x8xf32>
    %cst_36 = arith.constant dense<0.000000e+00> : vector<8xf32>
    %105 = vector.multi_reduction <add>, %104, %cst_36 [1] : vector<8x8xf32> to vector<8xf32>
    %106 = vector.shape_cast %105 : vector<8xf32> to vector<8x1xf32>
    %107 = tpu.reciprocal %106 {approx = true} : vector<8x1xf32> -> vector<8x1xf32>
    %108 = vector.broadcast %107 : vector<8x1xf32> to vector<8x8xf32>
    %109 = arith.mulf %104, %108 : vector<8x8xf32>
    %110 = arith.truncf %109 : vector<8x8xf32> to vector<8x8xbf16>
    %cst_37 = arith.constant dense<0.000000e+00> : vector<8x32xf32>
    %111 = tpu.matmul %110, %94, %cst_37 {dimension_numbers = #tpu.dot_dimension_numbers<[1], [0], [0], [1], [0, 0, 1, 1], [], []>} : vector<8x8xbf16>, vector<8x32xbf16>, vector<8x32xf32> -> vector<8x32xf32>
    %112 = arith.truncf %111 : vector<8x32xf32> to vector<8x32xbf16>
    %113 = vector.extract_strided_slice %18 {offsets = [96, 0], sizes = [32, 128], strides = [1, 1]} : vector<128x128xbf16> to vector<32x128xbf16>
    %cst_38 = arith.constant dense<0.000000e+00> : vector<8x128xf32>
    %114 = tpu.matmul %112, %113, %cst_38 {dimension_numbers = #tpu.dot_dimension_numbers<[1], [0], [0], [1], [0, 0, 1, 1], [], []>} : vector<8x32xbf16>, vector<32x128xbf16>, vector<8x128xf32> -> vector<8x128xf32>
    %115 = arith.addf %91, %114 : vector<8x128xf32>
    %c0_39 = arith.constant 0 : index
    %c0_40 = arith.constant 0 : index
    %116 = vector.load %arg6[%c0_39, %c0_40] : memref<1x128xf32, #tpu.memory_space<vmem>>, vector<1x128xf32>
    %117 = vector.broadcast %116 : vector<1x128xf32> to vector<8x128xf32>
    %118 = arith.addf %115, %117 : vector<8x128xf32>
    %119 = vector.shape_cast %118 : vector<8x128xf32> to vector<1x8x128xf32>
    %c0_41 = arith.constant 0 : index
    %c0_42 = arith.constant 0 : index
    %c0_43 = arith.constant 0 : index
    %120 = vector.load %arg7[%c0_41, %c0_42, %c0_43] : memref<1x8x128xf32, #tpu.memory_space<vmem>>, vector<1x8x128xf32>
    tpu.vector_store %arg7[%c0_41, %c0_42, %c0_43], %119 {strides = array<i32>} : memref<1x8x128xf32, #tpu.memory_space<vmem>>, vector<1x8x128xf32>,
    return
  }
  func.func @transform_0(%arg0: i32) -> (i32, i32, i32) {
    %c0_i32 = arith.constant 0 : i32
    %c0_i32_0 = arith.constant 0 : i32
    %c0_i32_1 = arith.constant 0 : i32
    return %arg0, %c0_i32, %c0_i32_0 : i32, i32, i32
  }
  func.func @transform_1(%arg0: i32) -> (i32, i32) {
    %c0_i32 = arith.constant 0 : i32
    %c0_i32_0 = arith.constant 0 : i32
    %c0_i32_1 = arith.constant 0 : i32
    return %c0_i32, %c0_i32_0 : i32, i32
  }
  func.func @transform_2(%arg0: i32) -> (i32, i32) {
    %c0_i32 = arith.constant 0 : i32
    %c0_i32_0 = arith.constant 0 : i32
    %c0_i32_1 = arith.constant 0 : i32
    return %c0_i32, %c0_i32_0 : i32, i32
  }
  func.func @transform_3(%arg0: i32) -> (i32, i32) {
    %c0_i32 = arith.constant 0 : i32
    %c0_i32_0 = arith.constant 0 : i32
    %c0_i32_1 = arith.constant 0 : i32
    return %c0_i32, %c0_i32_0 : i32, i32
  }
  func.func @transform_4(%arg0: i32) -> (i32, i32) {
    %c0_i32 = arith.constant 0 : i32
    %c0_i32_0 = arith.constant 0 : i32
    %c0_i32_1 = arith.constant 0 : i32
    return %c0_i32, %c0_i32_0 : i32, i32
  }
  func.func @transform_5(%arg0: i32) -> (i32, i32) {
    %c0_i32 = arith.constant 0 : i32
    %c0_i32_0 = arith.constant 0 : i32
    %c0_i32_1 = arith.constant 0 : i32
    return %c0_i32, %c0_i32_0 : i32, i32
  }
  func.func @transform_6(%arg0: i32) -> (i32, i32, i32) {
    %c0_i32 = arith.constant 0 : i32
    %c0_i32_0 = arith.constant 0 : i32
    %c0_i32_1 = arith.constant 0 : i32
    return %arg0, %c0_i32, %c0_i32_0 : i32, i32, i32
  }
}

</mosaic_0001>

<llo_original>
// kernel: tpu_custom_call.1
$region0: #{tpu_custom_call.1}
  #allocation0 [shape = 'u32[]', space=smem, size = 0x4, offset = 0x4, fixed_abs, tag = 'smem constant byte address 0x4 - core index']
  #allocation1 [shape = 'u32[144,128]{1,0:T(1,128)}', space=vmem, size = 0x12000, scoped, tag = 'internal scratch']
  %s0 = inlined_call_operand.hbm [shape: f32[2,8,128], index: 0, kind: input, shape index: {}]
  %s1 = inlined_call_operand.hbm [shape: bf16[128,128], index: 1, kind: input, shape index: {}]
  %s2 = inlined_call_operand.hbm [shape: bf16[128,128], index: 2, kind: input, shape index: {}]
  %s3 = inlined_call_operand.hbm [shape: bf16[128,128], index: 3, kind: input, shape index: {}]
  %s4 = inlined_call_operand.hbm [shape: bf16[128,128], index: 4, kind: input, shape index: {}]
  %s5 = inlined_call_operand.vmem [shape: f32[1,128], index: 5, kind: input, shape index: {}]
  %s6 = inlined_call_operand.hbm [shape: f32[2,8,128], index: 6, kind: output, shape index: {}]
  %s7 = sld [smem:[#allocation0]]
  $region77: #{tpu_custom_call.1} parent=0
    _
  %s9 = ssub.s32 1, %s7
  %s10 = scalar_select 0, %s9, %s7
  $region1: #{tpu_custom_call.1} parent=0
    #allocation2 [shape = 'u8[8192]{0}', space=vmem, size = 0x2000, scoped, tag = 'input window, operand 0']
    #allocation3 [shape = 's32[2]{0}', space=sflag, size = 0x8, scoped, tag = 'scoped memory for tpu_custom_call.1']
    #allocation4 [shape = 's32[2]{0}', space=sflag, size = 0x8, scoped, tag = 'scoped memory for tpu_custom_call.1']
    #allocation5 [shape = 'u8[32768]{0}', space=vmem, size = 0x8000, scoped, tag = 'input window, operand 1, single buffered']
    #allocation6 [shape = 's32[1]{0}', space=sflag, size = 0x4, scoped, tag = 'scoped memory for tpu_custom_call.1']
    #allocation7 [shape = 'u8[32768]{0}', space=vmem, size = 0x8000, scoped, tag = 'input window, operand 2, single buffered']
    #allocation8 [shape = 'u8[32768]{0}', space=vmem, size = 0x8000, scoped, tag = 'input window, operand 3, single buffered']
    #allocation9 [shape = 's32[1]{0}', space=sflag, size = 0x4, scoped, tag = 'scoped memory for tpu_custom_call.1']
    #allocation10 [shape = 'u8[32768]{0}', space=vmem, size = 0x8000, scoped, tag = 'input window, operand 4, single buffered']
    #allocation11 [shape = 'u8[8192]{0}', space=vmem, size = 0x2000, scoped, tag = 'output window, operand 0']
    %11 = vsyncpa [#allocation3], 0
    %s12 = scalar_lea.sflag [#allocation3], 1
    %13 = vsyncpa %s12, 0
    %14 = vsyncpa [#allocation6], 0
    %15 = vsyncpa [#allocation9], 0
    %16 = vsyncpa [#allocation4], 0
    %s17 = scalar_lea.sflag [#allocation4], 1
    %18 = vsyncpa %s17, 0
    loop: start=0, step=1, limit=4
    $region2: #{tpu_custom_call.1} parent=1 // loop_pre_header
      _
    $region3: #{tpu_custom_call.1} parent=1 // loop_header
      %s20 = sphi 0, %s24
      %p21 = scmp.ge.s32.totalorder %s20, 4
      %s30 = sphi 0, %s32
      %s33 = sphi 0, %s30
      %s34 = sphi 0, %s33
      %s50 = sphi 0, %s34
      %s54 = sphi 0, %s54
      %s56 = sphi 0, %s54
      %s57 = sphi 0, %s56
      %s71 = sphi 0, %s57
      %s75 = sphi 0, %s75
      %s77 = sphi 0, %s75
      %s78 = sphi 0, %s77
      %s92 = sphi 0, %s78
      %s96 = sphi 0, %s96
      %s98 = sphi 0, %s96
      %s99 = sphi 0, %s98
      %s113 = sphi 0, %s99
      %s117 = sphi 0, %s117
      %s119 = sphi 0, %s117
      %s120 = sphi 0, %s119
      %s134 = sphi 0, %s120
      %s138 = sphi 0, %s138
      %s140 = sphi 0, %s138
      %s141 = sphi 0, %s140
      %s155 = sphi 0, %s141
      %s161 = sphi 0, %s163
      %s164 = sphi 0, %s161
      %s165 = sphi 0, %s164
      %s181 = sphi 0, %s165
    $region4: #{tpu_custom_call.1} parent=1 // loop_header_branch
      %23 = sbr.rel (%p21) target = $region8
    $region5: #{tpu_custom_call.1} parent=1 // loop_body
      %s25 = ssub.s32 %s20, 1
      %s26 = ssub.s32 %s20, 2
      %s27 = sadd.s32 %s20, 1
      %s28 = ssub.s32 %s20, %s27
      %p29 = scmp.eq.s32.totalorder %s28, 0
      %s31 = sadd.s32 %s30, 1
      %s32 = scalar_select %p29, %s30, %s31
      %p35 = pneg %p29
      %p36 = scmp.eq.s32.totalorder %s20, 1
      %p37 = por %p35, %p36
      %p38 = scmp.ne.s32.totalorder %s30, %s33
      %p39 = scmp.eq.s32.totalorder %s20, 0
      %p40 = por %p38, %p39
      %p41 = scmp.ne.s32.totalorder %s30, %s33
      %p42 = scmp.eq.s32.totalorder %s25, 1
      %p43 = por %p41, %p42
      %p44 = scmp.ne.s32.totalorder %s33, %s34
      %p45 = scmp.eq.s32.totalorder %s25, 0
      %p46 = por %p44, %p45
      %p47 = scmp.ne.s32.totalorder %s33, %s34
      %p48 = scmp.eq.s32.totalorder %s26, 1
      %p49 = por %p47, %p48
      %p51 = scmp.ne.s32.totalorder %s34, %s50
      %p52 = scmp.eq.s32.totalorder %s26, 0
      %p53 = por %p51, %p52
      %s55 = sadd.s32 %s54, 1
      %p58 = scmp.eq.s32.totalorder %s20, 1
      %p59 = scmp.ne.s32.totalorder %s54, %s56
      %p60 = scmp.eq.s32.totalorder %s20, 0
      %p61 = por %p59, %p60
      %p62 = scmp.ne.s32.totalorder %s54, %s56
      %p63 = scmp.eq.s32.totalorder %s25, 1
      %p64 = por %p62, %p63
      %p65 = scmp.ne.s32.totalorder %s56, %s57
      %p66 = scmp.eq.s32.totalorder %s25, 0
      %p67 = por %p65, %p66
      %p68 = scmp.ne.s32.totalorder %s56, %s57
      %p69 = scmp.eq.s32.totalorder %s26, 1
      %p70 = por %p68, %p69
      %p72 = scmp.ne.s32.totalorder %s57, %s71
      %p73 = scmp.eq.s32.totalorder %s26, 0
      %p74 = por %p72, %p73
      %s76 = sadd.s32 %s75, 1
      %p79 = scmp.eq.s32.totalorder %s20, 1
      %p80 = scmp.ne.s32.totalorder %s75, %s77
      %p81 = scmp.eq.s32.totalorder %s20, 0
      %p82 = por %p80, %p81
      %p83 = scmp.ne.s32.totalorder %s75, %s77
      %p84 = scmp.eq.s32.totalorder %s25, 1
      %p85 = por %p83, %p84
      %p86 = scmp.ne.s32.totalorder %s77, %s78
      %p87 = scmp.eq.s32.totalorder %s25, 0
      %p88 = por %p86, %p87
      %p89 = scmp.ne.s32.totalorder %s77, %s78
      %p90 = scmp.eq.s32.totalorder %s26, 1
      %p91 = por %p89, %p90
      %p93 = scmp.ne.s32.totalorder %s78, %s92
      %p94 = scmp.eq.s32.totalorder %s26, 0
      %p95 = por %p93, %p94
      %s97 = sadd.s32 %s96, 1
      %p100 = scmp.eq.s32.totalorder %s20, 1
      %p101 = scmp.ne.s32.totalorder %s96, %s98
      %p102 = scmp.eq.s32.totalorder %s20, 0
      %p103 = por %p101, %p102
      %p104 = scmp.ne.s32.totalorder %s96, %s98
      %p105 = scmp.eq.s32.totalorder %s25, 1
      %p106 = por %p104, %p105
      %p107 = scmp.ne.s32.totalorder %s98, %s99
      %p108 = scmp.eq.s32.totalorder %s25, 0
      %p109 = por %p107, %p108
      %p110 = scmp.ne.s32.totalorder %s98, %s99
      %p111 = scmp.eq.s32.totalorder %s26, 1
      %p112 = por %p110, %p111
      %p114 = scmp.ne.s32.totalorder %s99, %s113
      %p115 = scmp.eq.s32.totalorder %s26, 0
      %p116 = por %p114, %p115
      %s118 = sadd.s32 %s117, 1
      %p121 = scmp.eq.s32.totalorder %s20, 1
      %p122 = scmp.ne.s32.totalorder %s117, %s119
      %p123 = scmp.eq.s32.totalorder %s20, 0
      %p124 = por %p122, %p123
      %p125 = scmp.ne.s32.totalorder %s117, %s119
      %p126 = scmp.eq.s32.totalorder %s25, 1
      %p127 = por %p125, %p126
      %p128 = scmp.ne.s32.totalorder %s119, %s120
      %p129 = scmp.eq.s32.totalorder %s25, 0
      %p130 = por %p128, %p129
      %p131 = scmp.ne.s32.totalorder %s119, %s120
      %p132 = scmp.eq.s32.totalorder %s26, 1
      %p133 = por %p131, %p132
      %p135 = scmp.ne.s32.totalorder %s120, %s134
      %p136 = scmp.eq.s32.totalorder %s26, 0
      %p137 = por %p135, %p136
      %s139 = sadd.s32 %s138, 1
      %p142 = scmp.eq.s32.totalorder %s20, 1
      %p143 = scmp.ne.s32.totalorder %s138, %s140
      %p144 = scmp.eq.s32.totalorder %s20, 0
      %p145 = por %p143, %p144
      %p146 = scmp.ne.s32.totalorder %s138, %s140
      %p147 = scmp.eq.s32.totalorder %s25, 1
      %p148 = por %p146, %p147
      %p149 = scmp.ne.s32.totalorder %s140, %s141
      %p150 = scmp.eq.s32.totalorder %s25, 0
      %p151 = por %p149, %p150
      %p152 = scmp.ne.s32.totalorder %s140, %s141
      %p153 = scmp.eq.s32.totalorder %s26, 1
      %p154 = por %p152, %p153
      %p156 = scmp.ne.s32.totalorder %s141, %s155
      %p157 = scmp.eq.s32.totalorder %s26, 0
      %p158 = por %p156, %p157
      %s159 = ssub.s32 %s20, %s27
      %p160 = scmp.eq.s32.totalorder %s159, 0
      %s162 = sadd.s32 %s161, 1
      %s163 = scalar_select %p160, %s161, %s162
      %p166 = pneg %p160
      %p167 = scmp.eq.s32.totalorder %s20, 1
      %p168 = por %p166, %p167
      %p169 = scmp.ne.s32.totalorder %s161, %s164
      %p170 = scmp.eq.s32.totalorder %s20, 0
      %p171 = por %p169, %p170
      %p172 = scmp.ne.s32.totalorder %s161, %s164
      %p173 = scmp.eq.s32.totalorder %s25, 1
      %p174 = por %p172, %p173
      %p175 = scmp.ne.s32.totalorder %s164, %s165
      %p176 = scmp.eq.s32.totalorder %s25, 0
      %p177 = por %p175, %p176
      %p178 = scmp.ne.s32.totalorder %s164, %s165
      %p179 = scmp.eq.s32.totalorder %s26, 1
      %p180 = por %p178, %p179
      %p182 = scmp.ne.s32.totalorder %s165, %s181
      %p183 = scmp.eq.s32.totalorder %s26, 0
      %p184 = por %p182, %p183
      %p185 = scmp.le.s32.totalorder 1, %s20
      %p186 = scmp.lt.s32.totalorder %s20, 3
      %p187 = pnand %p185, %p186
      %p188 = pneg %p187
      // Predicated region
      $region9: #{tpu_custom_call.1} parent=5 // pred_check
        _
      $region10: #{tpu_custom_call.1} parent=5 // pred_check_branch
        %190 = sbr.rel (%p187) target = $region12
      $region11: #{tpu_custom_call.1} parent=5 // pred_region
        %s191 = ssub.s32 %s20, 1
        // Predicated region
        $region13: #{tpu_custom_call.1} parent=11 // pred_check
          %p192 = pneg %p67
        $region14: #{tpu_custom_call.1} parent=11 // pred_check_branch
          %194 = sbr.rel (%p192) target = $region16
        $region15: #{tpu_custom_call.1} parent=11 // pred_region
          %s196 = ssub.s32 1024, 1024
          %197 = vsyncadd [#allocation6], %s196
          %s198 = sshll.u32 [#allocation5], 4
          %s199 = int_to_ptr.vmem [resolvable:$true] %s198
          %204 = dma.hbm_to_vmem [thread:$0]  %s1, 1024, %s199, [#allocation6], 64, 64, 4
        $region16: #{tpu_custom_call.1} parent=11 // pred_fallthru
          _
        // Predicated region
        $region17: #{tpu_custom_call.1} parent=11 // pred_check
          %p205 = pneg %p88
        $region18: #{tpu_custom_call.1} parent=11 // pred_check_branch
          %207 = sbr.rel (%p205) target = $region20
        $region19: #{tpu_custom_call.1} parent=11 // pred_region
          %s209 = ssub.s32 1024, 1024
          %210 = vsyncadd [#allocation6], %s209
          %s211 = sshll.u32 [#allocation7], 4
          %s212 = int_to_ptr.vmem [resolvable:$true] %s211
          %217 = dma.hbm_to_vmem [thread:$0]  %s2, 1024, %s212, [#allocation6], 64, 64, 4
        $region20: #{tpu_custom_call.1} parent=11 // pred_fallthru
          _
        // Predicated region
        $region21: #{tpu_custom_call.1} parent=11 // pred_check
          %p218 = pneg %p109
        $region22: #{tpu_custom_call.1} parent=11 // pred_check_branch
          %220 = sbr.rel (%p218) target = $region24
        $region23: #{tpu_custom_call.1} parent=11 // pred_region
          %s222 = ssub.s32 1024, 1024
          %223 = vsyncadd [#allocation9], %s222
          %s224 = sshll.u32 [#allocation8], 4
          %s225 = int_to_ptr.vmem [resolvable:$true] %s224
          %230 = dma.hbm_to_vmem [thread:$0]  %s3, 1024, %s225, [#allocation9], 64, 64, 4
        $region24: #{tpu_custom_call.1} parent=11 // pred_fallthru
          _
        // Predicated region
        $region25: #{tpu_custom_call.1} parent=11 // pred_check
          %p231 = pneg %p130
        $region26: #{tpu_custom_call.1} parent=11 // pred_check_branch
          %233 = sbr.rel (%p231) target = $region28
        $region27: #{tpu_custom_call.1} parent=11 // pred_region
          %s235 = ssub.s32 1024, 1024
          %236 = vsyncadd [#allocation9], %s235
          %s237 = sshll.u32 [#allocation10], 4
          %s238 = int_to_ptr.vmem [resolvable:$true] %s237
          %243 = dma.hbm_to_vmem [thread:$0]  %s4, 1024, %s238, [#allocation9], 64, 64, 4
        $region28: #{tpu_custom_call.1} parent=11 // pred_fallthru
          _
        // Predicated region
        $region29: #{tpu_custom_call.1} parent=11 // pred_check
          %p244 = pneg %p151
        $region30: #{tpu_custom_call.1} parent=11 // pred_check_branch
          %246 = sbr.rel (%p244) target = $region32
        $region31: #{tpu_custom_call.1} parent=11 // pred_region
          _
        $region32: #{tpu_custom_call.1} parent=11 // pred_fallthru
          _
      $region12: #{tpu_custom_call.1} parent=5 // pred_fallthru
        _
      %p247 = scmp.lt.s32.totalorder %s20, 2
      // Predicated region
      $region33: #{tpu_custom_call.1} parent=5 // pred_check
        %p248 = pneg %p247
      $region34: #{tpu_custom_call.1} parent=5 // pred_check_branch
        %250 = sbr.rel (%p248) target = $region36
      $region35: #{tpu_custom_call.1} parent=5 // pred_region
        // Predicated region
        $region37: #{tpu_custom_call.1} parent=35 // pred_check
          %p251 = pneg %p40
        $region38: #{tpu_custom_call.1} parent=35 // pred_check_branch
          %253 = sbr.rel (%p251) target = $region40
        $region39: #{tpu_custom_call.1} parent=35 // pred_region
          %s254 = sand.u32 %s30, 1
          %s255 = scalar_lea.sflag [#allocation3], %s254
          %s256 = sand.u32 %s30, 1
          %s257 = smul.addr %s256, 8
          %s258 = scalar_lea.vmem [#allocation2], %s257
          %s260 = ssub.s32 128, 128
          %261 = vsyncadd %s255, %s260
          %s262 = smul.addr %s20, 128
          %s263 = scalar_lea.hbm %s0, %s262
          %s265 = sshll.u32 %s258, 4
          %s266 = int_to_ptr.vmem [resolvable:$true] %s265
          %268 = dma.hbm_to_vmem [thread:$0]  %s263, 128, %s266, %s255
        $region40: #{tpu_custom_call.1} parent=35 // pred_fallthru
          _
      $region36: #{tpu_custom_call.1} parent=5 // pred_fallthru
        _
      %p269 = scmp.le.s32.totalorder 1, %s20
      %p270 = scmp.lt.s32.totalorder %s20, 3
      %p271 = pnand %p269, %p270
      %p272 = pneg %p271
      // Predicated region
      $region41: #{tpu_custom_call.1} parent=5 // pred_check
        _
      $region42: #{tpu_custom_call.1} parent=5 // pred_check_branch
        %274 = sbr.rel (%p271) target = $region44
      $region43: #{tpu_custom_call.1} parent=5 // pred_region
        %s275 = ssub.s32 %s20, 1
        %s276 = sand.u32 %s33, 1
        %s277 = scalar_lea.sflag [#allocation3], %s276
        %s278 = sand.u32 %s33, 1
        %s279 = smul.addr %s278, 8
        %s280 = scalar_lea.vmem [#allocation2], %s279
        // Predicated region
        $region45: #{tpu_custom_call.1} parent=43 // pred_check
          %p281 = pneg %p46
        $region46: #{tpu_custom_call.1} parent=43 // pred_check_branch
          %283 = sbr.rel (%p281) target = $region48
        $region47: #{tpu_custom_call.1} parent=43 // pred_region
          %284 = dma.done %s277, 128
        $region48: #{tpu_custom_call.1} parent=43 // pred_fallthru
          _
        // Predicated region
        $region49: #{tpu_custom_call.1} parent=43 // pred_check
          %p285 = pneg %p67
        $region50: #{tpu_custom_call.1} parent=43 // pred_check_branch
          %287 = sbr.rel (%p285) target = $region52
        $region51: #{tpu_custom_call.1} parent=43 // pred_region
          %288 = dma.done [#allocation6], 1024
        $region52: #{tpu_custom_call.1} parent=43 // pred_fallthru
          _
        // Predicated region
        $region53: #{tpu_custom_call.1} parent=43 // pred_check
          %p289 = pneg %p88
        $region54: #{tpu_custom_call.1} parent=43 // pred_check_branch
          %291 = sbr.rel (%p289) target = $region56
        $region55: #{tpu_custom_call.1} parent=43 // pred_region
          %292 = dma.done [#allocation6], 1024
        $region56: #{tpu_custom_call.1} parent=43 // pred_fallthru
          _
        // Predicated region
        $region57: #{tpu_custom_call.1} parent=43 // pred_check
          %p293 = pneg %p109
        $region58: #{tpu_custom_call.1} parent=43 // pred_check_branch
          %295 = sbr.rel (%p293) target = $region60
        $region59: #{tpu_custom_call.1} parent=43 // pred_region
          %296 = dma.done [#allocation9], 1024
        $region60: #{tpu_custom_call.1} parent=43 // pred_fallthru
          _
        // Predicated region
        $region61: #{tpu_custom_call.1} parent=43 // pred_check
          %p297 = pneg %p130
        $region62: #{tpu_custom_call.1} parent=43 // pred_check_branch
          %299 = sbr.rel (%p297) target = $region64
        $region63: #{tpu_custom_call.1} parent=43 // pred_region
          %300 = dma.done [#allocation9], 1024
        $region64: #{tpu_custom_call.1} parent=43 // pred_fallthru
          _
        %s301 = sand.u32 %s33, 1
        %s302 = scalar_lea.sflag [#allocation3], %s301
        %s303 = sand.u32 %s33, 1
        %s304 = smul.addr %s303, 8
        %s305 = scalar_lea.vmem [#allocation2], %s304
        %p306 = pneg %p46
        %p307 = pneg %p43
        %p308 = pneg %p67
        %p309 = pneg %p64
        %p310 = pneg %p88
        %p311 = pneg %p85
        %p312 = pneg %p109
        %p313 = pneg %p106
        %p314 = pneg %p130
        %p315 = pneg %p127
        %p316 = pneg %p151
        %p317 = pneg %p148
        %p318 = pneg %p177
        %p319 = pneg %p174
        %s320 = sand.u32 %s164, 1
        %s321 = scalar_lea.sflag [#allocation4], %s320
        %s322 = sand.u32 %s164, 1
        %s323 = smul.addr %s322, 8
        %s324 = scalar_lea.vmem [#allocation11], %s323
        %v326 = vld [vmem:[%s280] sm:$0xff]
        %v327 = vpack.c.bf16 %v326, %v326
        %v328 = vld [vmem:[#allocation5] sm:$0xf]
        %v329 = vld [vmem:[#allocation5 + $0x4] sm:$0xf]
        %v330 = vld [vmem:[#allocation5 + $0x8] sm:$0xf]
        %v331 = vld [vmem:[#allocation5 + $0xc] sm:$0xf]
        %v332 = vld [vmem:[#allocation5 + $0x10] sm:$0xf]
        %v333 = vld [vmem:[#allocation5 + $0x14] sm:$0xf]
        %v334 = vld [vmem:[#allocation5 + $0x18] sm:$0xf]
        %v335 = vld [vmem:[#allocation5 + $0x1c] sm:$0xf]
        %v336 = vld [vmem:[#allocation5 + $0x20] sm:$0xf]
        %v337 = vld [vmem:[#allocation5 + $0x24] sm:$0xf]
        %v338 = vld [vmem:[#allocation5 + $0x28] sm:$0xf]
        %v339 = vld [vmem:[#allocation5 + $0x2c] sm:$0xf]
        %v340 = vld [vmem:[#allocation5 + $0x30] sm:$0xf]
        %v341 = vld [vmem:[#allocation5 + $0x34] sm:$0xf]
        %v342 = vld [vmem:[#allocation5 + $0x38] sm:$0xf]
        %v343 = vld [vmem:[#allocation5 + $0x3c] sm:$0xf]
        %v360 = vunpack.c.l.b16 %v328
        %v361 = vunpack.c.l.b16 %v329
        %v362 = vunpack.c.l.b16 %v330
        %v363 = vunpack.c.l.b16 %v331
        %v364 = vunpack.c.l.b16 %v332
        %v365 = vunpack.c.l.b16 %v333
        %v366 = vunpack.c.l.b16 %v334
        %v367 = vunpack.c.l.b16 %v335
        %v368 = vunpack.c.l.b16 %v336
        %v369 = vunpack.c.l.b16 %v337
        %v370 = vunpack.c.l.b16 %v338
        %v371 = vunpack.c.l.b16 %v339
        %v372 = vunpack.c.l.b16 %v340
        %v373 = vunpack.c.l.b16 %v341
        %v374 = vunpack.c.l.b16 %v342
        %v375 = vunpack.c.l.b16 %v343
        %v376 = vpack.c.b16 %v361, %v360
        %v377 = vpack.c.b16 %v363, %v362
        %v378 = vpack.c.b16 %v365, %v364
        %v379 = vpack.c.b16 %v367, %v366
        %v380 = vpack.c.b16 %v369, %v368
        %v381 = vpack.c.b16 %v371, %v370
        %v382 = vpack.c.b16 %v373, %v372
        %v383 = vpack.c.b16 %v375, %v374
        %392 = vmatprep.subr.bf16.mxu0 0
        %393 = vmatpush1.bf16.msra.mxu0 %v376
        %394 = vmatprep.subr.bf16.mxu0 0
        %395 = vmatpush1.bf16.msra.mxu0 %v377
        %396 = vmatprep.subr.bf16.mxu0 0
        %397 = vmatpush1.bf16.msra.mxu0 %v378
        %398 = vmatprep.subr.bf16.mxu0 0
        %399 = vmatpush1.bf16.msra.mxu0 %v379
        %400 = vmatprep.subr.bf16.mxu0 0
        %401 = vmatpush1.bf16.msra.mxu0 %v380
        %402 = vmatprep.subr.bf16.mxu0 0
        %403 = vmatpush1.bf16.msra.mxu0 %v381
        %404 = vmatprep.subr.bf16.mxu0 0
        %405 = vmatpush1.bf16.msra.mxu0 %v382
        %406 = vmatprep.subr.bf16.mxu0 0
        %407 = vmatpush1.bf16.msra.mxu0 %v383
        %408 = vmatprep.subr.bf16.mxu0 0
        %409 = vmatpush1.bf16.msra.mxu0 0
        %410 = vmatprep.subr.bf16.mxu0 0
        %411 = vmatpush1.bf16.msra.mxu0 0
        %412 = vmatprep.subr.bf16.mxu0 0
        %413 = vmatpush1.bf16.msra.mxu0 0
        %414 = vmatprep.subr.bf16.mxu0 0
        %415 = vmatpush1.bf16.msra.mxu0 0
        %416 = vmatprep.subr.bf16.mxu0 0
        %417 = vmatpush1.bf16.msra.mxu0 0
        %418 = vmatprep.subr.bf16.mxu0 0
        %419 = vmatpush1.bf16.msra.mxu0 0
        %420 = vmatprep.subr.bf16.mxu0 0
        %421 = vmatpush1.bf16.msra.mxu0 0
        %422 = vmatprep.subr.bf16.mxu0 0
        %423 = vmatpush1.bf16.msra.mxu0 0
        %424 = vmatprep.mubr.bf16.mxu0 0
        %425 = vmatmul.mubr.bf16.gmra.mrb[0].mxu0 %v327
        %v426 = vpop.f32.mrb[0].mxu0
        %v427 = vadd.f32 0.0, %v426
        %v428 = vpop.f32.mrb[0].mxu0
        %v429 = vpop.f32.mrb[0].mxu0
        %v430 = vpop.f32.mrb[0].mxu0
        %431 = vdwg.mxu0
        %v432 = vld [vmem:[#allocation7] sm:$0xf]
        %v433 = vld [vmem:[#allocation7 + $0x4] sm:$0xf]
        %v434 = vld [vmem:[#allocation7 + $0x8] sm:$0xf]
        %v435 = vld [vmem:[#allocation7 + $0xc] sm:$0xf]
        %v436 = vld [vmem:[#allocation7 + $0x10] sm:$0xf]
        %v437 = vld [vmem:[#allocation7 + $0x14] sm:$0xf]
        %v438 = vld [vmem:[#allocation7 + $0x18] sm:$0xf]
        %v439 = vld [vmem:[#allocation7 + $0x1c] sm:$0xf]
        %v440 = vld [vmem:[#allocation7 + $0x20] sm:$0xf]
        %v441 = vld [vmem:[#allocation7 + $0x24] sm:$0xf]
        %v442 = vld [vmem:[#allocation7 + $0x28] sm:$0xf]
        %v443 = vld [vmem:[#allocation7 + $0x2c] sm:$0xf]
        %v444 = vld [vmem:[#allocation7 + $0x30] sm:$0xf]
        %v445 = vld [vmem:[#allocation7 + $0x34] sm:$0xf]
        %v446 = vld [vmem:[#allocation7 + $0x38] sm:$0xf]
        %v447 = vld [vmem:[#allocation7 + $0x3c] sm:$0xf]
        %v464 = vunpack.c.l.b16 %v432
        %v465 = vunpack.c.l.b16 %v433
        %v466 = vunpack.c.l.b16 %v434
        %v467 = vunpack.c.l.b16 %v435
        %v468 = vunpack.c.l.b16 %v436
        %v469 = vunpack.c.l.b16 %v437
        %v470 = vunpack.c.l.b16 %v438
        %v471 = vunpack.c.l.b16 %v439
        %v472 = vunpack.c.l.b16 %v440
        %v473 = vunpack.c.l.b16 %v441
        %v474 = vunpack.c.l.b16 %v442
        %v475 = vunpack.c.l.b16 %v443
        %v476 = vunpack.c.l.b16 %v444
        %v477 = vunpack.c.l.b16 %v445
        %v478 = vunpack.c.l.b16 %v446
        %v479 = vunpack.c.l.b16 %v447
        %v480 = vpack.c.b16 %v465, %v464
        %v481 = vpack.c.b16 %v467, %v466
        %v482 = vpack.c.b16 %v469, %v468
        %v483 = vpack.c.b16 %v471, %v470
        %v484 = vpack.c.b16 %v473, %v472
        %v485 = vpack.c.b16 %v475, %v474
        %v486 = vpack.c.b16 %v477, %v476
        %v487 = vpack.c.b16 %v479, %v478
        %496 = vmatprep.subr.bf16.mxu0 0
        %497 = vmatpush1.bf16.msra.mxu0 %v480
        %498 = vmatprep.subr.bf16.mxu0 0
        %499 = vmatpush1.bf16.msra.mxu0 %v481
        %500 = vmatprep.subr.bf16.mxu0 0
        %501 = vmatpush1.bf16.msra.mxu0 %v482
        %502 = vmatprep.subr.bf16.mxu0 0
        %503 = vmatpush1.bf16.msra.mxu0 %v483
        %504 = vmatprep.subr.bf16.mxu0 0
        %505 = vmatpush1.bf16.msra.mxu0 %v484
        %506 = vmatprep.subr.bf16.mxu0 0
        %507 = vmatpush1.bf16.msra.mxu0 %v485
        %508 = vmatprep.subr.bf16.mxu0 0
        %509 = vmatpush1.bf16.msra.mxu0 %v486
        %510 = vmatprep.subr.bf16.mxu0 0
        %511 = vmatpush1.bf16.msra.mxu0 %v487
        %512 = vmatprep.subr.bf16.mxu0 0
        %513 = vmatpush1.bf16.msra.mxu0 0
        %514 = vmatprep.subr.bf16.mxu0 0
        %515 = vmatpush1.bf16.msra.mxu0 0
        %516 = vmatprep.subr.bf16.mxu0 0
        %517 = vmatpush1.bf16.msra.mxu0 0
        %518 = vmatprep.subr.bf16.mxu0 0
        %519 = vmatpush1.bf16.msra.mxu0 0
        %520 = vmatprep.subr.bf16.mxu0 0
        %521 = vmatpush1.bf16.msra.mxu0 0
        %522 = vmatprep.subr.bf16.mxu0 0
        %523 = vmatpush1.bf16.msra.mxu0 0
        %524 = vmatprep.subr.bf16.mxu0 0
        %525 = vmatpush1.bf16.msra.mxu0 0
        %526 = vmatprep.subr.bf16.mxu0 0
        %527 = vmatpush1.bf16.msra.mxu0 0
        %528 = vmatprep.mubr.bf16.mxu0 0
        %529 = vmatmul.mubr.bf16.gmra.mrb[0].mxu0 %v327
        %v530 = vpop.f32.mrb[0].mxu0
        %v531 = vadd.f32 0.0, %v530
        %v532 = vpop.f32.mrb[0].mxu0
        %v533 = vpop.f32.mrb[0].mxu0
        %v534 = vpop.f32.mrb[0].mxu0
        %535 = vdwg.mxu0
        %v536 = vld [vmem:[#allocation8] sm:$0xf]
        %v537 = vld [vmem:[#allocation8 + $0x4] sm:$0xf]
        %v538 = vld [vmem:[#allocation8 + $0x8] sm:$0xf]
        %v539 = vld [vmem:[#allocation8 + $0xc] sm:$0xf]
        %v540 = vld [vmem:[#allocation8 + $0x10] sm:$0xf]
        %v541 = vld [vmem:[#allocation8 + $0x14] sm:$0xf]
        %v542 = vld [vmem:[#allocation8 + $0x18] sm:$0xf]
        %v543 = vld [vmem:[#allocation8 + $0x1c] sm:$0xf]
        %v544 = vld [vmem:[#allocation8 + $0x20] sm:$0xf]
        %v545 = vld [vmem:[#allocation8 + $0x24] sm:$0xf]
        %v546 = vld [vmem:[#allocation8 + $0x28] sm:$0xf]
        %v547 = vld [vmem:[#allocation8 + $0x2c] sm:$0xf]
        %v548 = vld [vmem:[#allocation8 + $0x30] sm:$0xf]
        %v549 = vld [vmem:[#allocation8 + $0x34] sm:$0xf]
        %v550 = vld [vmem:[#allocation8 + $0x38] sm:$0xf]
        %v551 = vld [vmem:[#allocation8 + $0x3c] sm:$0xf]
        %v568 = vunpack.c.l.b16 %v536
        %v569 = vunpack.c.l.b16 %v537
        %v570 = vunpack.c.l.b16 %v538
        %v571 = vunpack.c.l.b16 %v539
        %v572 = vunpack.c.l.b16 %v540
        %v573 = vunpack.c.l.b16 %v541
        %v574 = vunpack.c.l.b16 %v542
        %v575 = vunpack.c.l.b16 %v543
        %v576 = vunpack.c.l.b16 %v544
        %v577 = vunpack.c.l.b16 %v545
        %v578 = vunpack.c.l.b16 %v546
        %v579 = vunpack.c.l.b16 %v547
        %v580 = vunpack.c.l.b16 %v548
        %v581 = vunpack.c.l.b16 %v549
        %v582 = vunpack.c.l.b16 %v550
        %v583 = vunpack.c.l.b16 %v551
        %v584 = vpack.c.b16 %v569, %v568
        %v585 = vpack.c.b16 %v571, %v570
        %v586 = vpack.c.b16 %v573, %v572
        %v587 = vpack.c.b16 %v575, %v574
        %v588 = vpack.c.b16 %v577, %v576
        %v589 = vpack.c.b16 %v579, %v578
        %v590 = vpack.c.b16 %v581, %v580
        %v591 = vpack.c.b16 %v583, %v582
        %600 = vmatprep.subr.bf16.mxu0 0
        %601 = vmatpush1.bf16.msra.mxu0 %v584
        %602 = vmatprep.subr.bf16.mxu0 0
        %603 = vmatpush1.bf16.msra.mxu0 %v585
        %604 = vmatprep.subr.bf16.mxu0 0
        %605 = vmatpush1.bf16.msra.mxu0 %v586
        %606 = vmatprep.subr.bf16.mxu0 0
        %607 = vmatpush1.bf16.msra.mxu0 %v587
        %608 = vmatprep.subr.bf16.mxu0 0
        %609 = vmatpush1.bf16.msra.mxu0 %v588
        %610 = vmatprep.subr.bf16.mxu0 0
        %611 = vmatpush1.bf16.msra.mxu0 %v589
        %612 = vmatprep.subr.bf16.mxu0 0
        %613 = vmatpush1.bf16.msra.mxu0 %v590
        %614 = vmatprep.subr.bf16.mxu0 0
        %615 = vmatpush1.bf16.msra.mxu0 %v591
        %616 = vmatprep.subr.bf16.mxu0 0
        %617 = vmatpush1.bf16.msra.mxu0 0
        %618 = vmatprep.subr.bf16.mxu0 0
        %619 = vmatpush1.bf16.msra.mxu0 0
        %620 = vmatprep.subr.bf16.mxu0 0
        %621 = vmatpush1.bf16.msra.mxu0 0
        %622 = vmatprep.subr.bf16.mxu0 0
        %623 = vmatpush1.bf16.msra.mxu0 0
        %624 = vmatprep.subr.bf16.mxu0 0
        %625 = vmatpush1.bf16.msra.mxu0 0
        %626 = vmatprep.subr.bf16.mxu0 0
        %627 = vmatpush1.bf16.msra.mxu0 0
        %628 = vmatprep.subr.bf16.mxu0 0
        %629 = vmatpush1.bf16.msra.mxu0 0
        %630 = vmatprep.subr.bf16.mxu0 0
        %631 = vmatpush1.bf16.msra.mxu0 0
        %632 = vmatprep.mubr.bf16.mxu0 0
        %633 = vmatmul.mubr.bf16.gmra.mrb[0].mxu0 %v327
        %v634 = vpop.f32.mrb[0].mxu0
        %v635 = vadd.f32 0.0, %v634
        %v636 = vpop.f32.mrb[0].mxu0
        %v637 = vpop.f32.mrb[0].mxu0
        %v638 = vpop.f32.mrb[0].mxu0
        %639 = vdwg.mxu0
        %v640 = vpack.c.bf16 %v427, %v427
        %v641 = vpack.c.bf16 %v531, %v531
        %v642 = vpack.c.bf16 %v635, %v635
        %v643 = vlaneseq
        %v644 = vshrl.u32 %v643, 7
        %v645 = vlaneseq
        %v646 = vand.u32 %v645, 127
        %vm647 = vcmp.le.s32.totalorder %v646, %v644
        %v648 = vsel %vm647, 0.0, -inf
        %v649 = vld [vmem:[#allocation10] sm:$0xf]
        %v650 = vld [vmem:[#allocation10 + $0x4] sm:$0xf]
        %v651 = vld [vmem:[#allocation10 + $0x8] sm:$0xf]
        %v652 = vld [vmem:[#allocation10 + $0xc] sm:$0xf]
        %v653 = vld [vmem:[#allocation10 + $0x10] sm:$0xf]
        %v654 = vld [vmem:[#allocation10 + $0x14] sm:$0xf]
        %v655 = vld [vmem:[#allocation10 + $0x18] sm:$0xf]
        %v656 = vld [vmem:[#allocation10 + $0x1c] sm:$0xf]
        %v657 = vld [vmem:[#allocation10 + $0x20] sm:$0xf]
        %v658 = vld [vmem:[#allocation10 + $0x24] sm:$0xf]
        %v659 = vld [vmem:[#allocation10 + $0x28] sm:$0xf]
        %v660 = vld [vmem:[#allocation10 + $0x2c] sm:$0xf]
        %v661 = vld [vmem:[#allocation10 + $0x30] sm:$0xf]
        %v662 = vld [vmem:[#allocation10 + $0x34] sm:$0xf]
        %v663 = vld [vmem:[#allocation10 + $0x38] sm:$0xf]
        %v664 = vld [vmem:[#allocation10 + $0x3c] sm:$0xf]
        %vm665 = vcmask 261120
        %v667 = vsel %vm665, %v640, 0
        %v670 = vsel %vm665, %v641, 0
        %672 = vmatprep.subr.bf16.mxu0 0
        %673 = vmatpush1.bf16.xpose.msra.mxu0 %v670
        %674 = vmatprep.subr.bf16.mxu0 0
        %675 = vmatpush1.bf16.xpose.msra.mxu0 0
        %676 = vmatprep.subr.bf16.mxu0 0
        %677 = vmatpush1.bf16.xpose.msra.mxu0 0
        %678 = vmatprep.subr.bf16.mxu0 0
        %679 = vmatpush1.bf16.xpose.msra.mxu0 0
        %680 = vmatprep.subr.bf16.mxu0 0
        %681 = vmatpush1.bf16.xpose.msra.mxu0 0
        %682 = vmatprep.subr.bf16.mxu0 0
        %683 = vmatpush1.bf16.xpose.msra.mxu0 0
        %684 = vmatprep.subr.bf16.mxu0 0
        %685 = vmatpush1.bf16.xpose.msra.mxu0 0
        %686 = vmatprep.subr.bf16.mxu0 0
        %687 = vmatpush1.bf16.xpose.msra.mxu0 0
        %688 = vmatprep.subr.bf16.mxu0 0
        %689 = vmatpush1.bf16.xpose.msra.mxu0 0
        %690 = vmatprep.subr.bf16.mxu0 0
        %691 = vmatpush1.bf16.xpose.msra.mxu0 0
        %692 = vmatprep.subr.bf16.mxu0 0
        %693 = vmatpush1.bf16.xpose.msra.mxu0 0
        %694 = vmatprep.subr.bf16.mxu0 0
        %695 = vmatpush1.bf16.xpose.msra.mxu0 0
        %696 = vmatprep.subr.bf16.mxu0 0
        %697 = vmatpush1.bf16.xpose.msra.mxu0 0
        %698 = vmatprep.subr.bf16.mxu0 0
        %699 = vmatpush1.bf16.xpose.msra.mxu0 0
        %700 = vmatprep.subr.bf16.mxu0 0
        %701 = vmatpush1.bf16.xpose.msra.mxu0 0
        %702 = vmatprep.subr.bf16.mxu0 0
        %703 = vmatpush1.bf16.xpose.msra.mxu0 0
        %704 = vmatprep.mubr.bf16.mxu0 0
        %705 = vmatmul.mubr.bf16.gmra.mrb[0].mxu0 %v667
        %v706 = vpop.f32.mrb[0].mxu0
        %v707 = vadd.f32 0.0, %v706
        %v708 = vpop.f32.mrb[0].mxu0
        %v709 = vpop.f32.mrb[0].mxu0
        %v710 = vpop.f32.mrb[0].mxu0
        %711 = vdwg.mxu0
        %v712 = vmul.f32 %v707, 0.17677669
        %v713 = vadd.f32 %v712, %v648
        %vm714 = vcmask 64512
        %v715 = vsel %vm714, %v713, -inf
        %716 = vmax.xlane.f32.xlu0 %v715
        %v717 = vpop.xlane.xlu0 %716
        %v718 = vsub.f32 %v713, %v717
        %v719 = vmul.f32 %v718, 1.442695
        %v720 = vpow.pop %v719
        %v721 = vsel %vm714, %v720, 0.0
        %722 = vadd.xlane.f32.xlu0 %v721
        %v723 = vpop.xlane.xlu0 %722
        %v724 = vrcp.pop %v723
        %v725 = vmul.f32 %v720, %v724
        %v726 = vpack.c.bf16 %v725, %v725
        %v728 = vsel %vm714, %v726, 0
        %vm730 = vcmask 1043456
        %v732 = vsel %vm730, %v642, 0
        %734 = vmatprep.subr.bf16.mxu0 0
        %735 = vmatpush1.bf16.msra.mxu0 %v732
        %736 = vmatprep.subr.bf16.mxu0 0
        %737 = vmatpush1.bf16.msra.mxu0 0
        %738 = vmatprep.subr.bf16.mxu0 0
        %739 = vmatpush1.bf16.msra.mxu0 0
        %740 = vmatprep.subr.bf16.mxu0 0
        %741 = vmatpush1.bf16.msra.mxu0 0
        %742 = vmatprep.subr.bf16.mxu0 0
        %743 = vmatpush1.bf16.msra.mxu0 0
        %744 = vmatprep.subr.bf16.mxu0 0
        %745 = vmatpush1.bf16.msra.mxu0 0
        %746 = vmatprep.subr.bf16.mxu0 0
        %747 = vmatpush1.bf16.msra.mxu0 0
        %748 = vmatprep.subr.bf16.mxu0 0
        %749 = vmatpush1.bf16.msra.mxu0 0
        %750 = vmatprep.subr.bf16.mxu0 0
        %751 = vmatpush1.bf16.msra.mxu0 0
        %752 = vmatprep.subr.bf16.mxu0 0
        %753 = vmatpush1.bf16.msra.mxu0 0
        %754 = vmatprep.subr.bf16.mxu0 0
        %755 = vmatpush1.bf16.msra.mxu0 0
        %756 = vmatprep.subr.bf16.mxu0 0
        %757 = vmatpush1.bf16.msra.mxu0 0
        %758 = vmatprep.subr.bf16.mxu0 0
        %759 = vmatpush1.bf16.msra.mxu0 0
        %760 = vmatprep.subr.bf16.mxu0 0
        %761 = vmatpush1.bf16.msra.mxu0 0
        %762 = vmatprep.subr.bf16.mxu0 0
        %763 = vmatpush1.bf16.msra.mxu0 0
        %764 = vmatprep.subr.bf16.mxu0 0
        %765 = vmatpush1.bf16.msra.mxu0 0
        %766 = vmatprep.mubr.bf16.mxu0 0
        %767 = vmatmul.mubr.bf16.gmra.mrb[0].mxu0 %v728
        %v768 = vpop.f32.mrb[0].mxu0
        %v769 = vadd.f32 0.0, %v768
        %v770 = vpop.f32.mrb[0].mxu0
        %v771 = vpop.f32.mrb[0].mxu0
        %v772 = vpop.f32.mrb[0].mxu0
        %773 = vdwg.mxu0
        %v774 = vpack.c.bf16 %v769, %v769
        %776 = vrot.lane.b32.xlu0 %v640, 96
        %v777 = vpop.permute.xlu0 %776
        %779 = vrot.lane.b32.xlu0 %v641, 96
        %v780 = vpop.permute.xlu0 %779
        %v782 = vsel %vm665, %v777, 0
        %v785 = vsel %vm665, %v780, 0
        %787 = vmatprep.subr.bf16.mxu0 0
        %788 = vmatpush1.bf16.xpose.msra.mxu0 %v785
        %789 = vmatprep.subr.bf16.mxu0 0
        %790 = vmatpush1.bf16.xpose.msra.mxu0 0
        %791 = vmatprep.subr.bf16.mxu0 0
        %792 = vmatpush1.bf16.xpose.msra.mxu0 0
        %793 = vmatprep.subr.bf16.mxu0 0
        %794 = vmatpush1.bf16.xpose.msra.mxu0 0
        %795 = vmatprep.subr.bf16.mxu0 0
        %796 = vmatpush1.bf16.xpose.msra.mxu0 0
        %797 = vmatprep.subr.bf16.mxu0 0
        %798 = vmatpush1.bf16.xpose.msra.mxu0 0
        %799 = vmatprep.subr.bf16.mxu0 0
        %800 = vmatpush1.bf16.xpose.msra.mxu0 0
        %801 = vmatprep.subr.bf16.mxu0 0
        %802 = vmatpush1.bf16.xpose.msra.mxu0 0
        %803 = vmatprep.subr.bf16.mxu0 0
        %804 = vmatpush1.bf16.xpose.msra.mxu0 0
        %805 = vmatprep.subr.bf16.mxu0 0
        %806 = vmatpush1.bf16.xpose.msra.mxu0 0
        %807 = vmatprep.subr.bf16.mxu0 0
        %808 = vmatpush1.bf16.xpose.msra.mxu0 0
        %809 = vmatprep.subr.bf16.mxu0 0
        %810 = vmatpush1.bf16.xpose.msra.mxu0 0
        %811 = vmatprep.subr.bf16.mxu0 0
        %812 = vmatpush1.bf16.xpose.msra.mxu0 0
        %813 = vmatprep.subr.bf16.mxu0 0
        %814 = vmatpush1.bf16.xpose.msra.mxu0 0
        %815 = vmatprep.subr.bf16.mxu0 0
        %816 = vmatpush1.bf16.xpose.msra.mxu0 0
        %817 = vmatprep.subr.bf16.mxu0 0
        %818 = vmatpush1.bf16.xpose.msra.mxu0 0
        %819 = vmatprep.mubr.bf16.mxu0 0
        %820 = vmatmul.mubr.bf16.gmra.mrb[0].mxu0 %v782
        %v821 = vpop.f32.mrb[0].mxu0
        %v822 = vadd.f32 0.0, %v821
        %v823 = vpop.f32.mrb[0].mxu0
        %v824 = vpop.f32.mrb[0].mxu0
        %v825 = vpop.f32.mrb[0].mxu0
        %826 = vdwg.mxu0
        %v827 = vmul.f32 %v822, 0.17677669
        %v828 = vadd.f32 %v827, %v648
        %v829 = vsel %vm714, %v828, -inf
        %830 = vmax.xlane.f32.xlu0 %v829
        %v831 = vpop.xlane.xlu0 %830
        %v832 = vsub.f32 %v828, %v831
        %v833 = vmul.f32 %v832, 1.442695
        %v834 = vpow.pop %v833
        %v835 = vsel %vm714, %v834, 0.0
        %836 = vadd.xlane.f32.xlu0 %v835
        %v837 = vpop.xlane.xlu0 %836
        %v838 = vrcp.pop %v837
        %v839 = vmul.f32 %v834, %v838
        %v840 = vpack.c.bf16 %v839, %v839
        %842 = vrot.lane.b32.xlu0 %v642, 96
        %v843 = vpop.permute.xlu0 %842
        %v845 = vsel %vm714, %v840, 0
        %v848 = vsel %vm730, %v843, 0
        %850 = vmatprep.subr.bf16.mxu0 0
        %851 = vmatpush1.bf16.msra.mxu0 %v848
        %852 = vmatprep.subr.bf16.mxu0 0
        %853 = vmatpush1.bf16.msra.mxu0 0
        %854 = vmatprep.subr.bf16.mxu0 0
        %855 = vmatpush1.bf16.msra.mxu0 0
        %856 = vmatprep.subr.bf16.mxu0 0
        %857 = vmatpush1.bf16.msra.mxu0 0
        %858 = vmatprep.subr.bf16.mxu0 0
        %859 = vmatpush1.bf16.msra.mxu0 0
        %860 = vmatprep.subr.bf16.mxu0 0
        %861 = vmatpush1.bf16.msra.mxu0 0
        %862 = vmatprep.subr.bf16.mxu0 0
        %863 = vmatpush1.bf16.msra.mxu0 0
        %864 = vmatprep.subr.bf16.mxu0 0
        %865 = vmatpush1.bf16.msra.mxu0 0
        %866 = vmatprep.subr.bf16.mxu0 0
        %867 = vmatpush1.bf16.msra.mxu0 0
        %868 = vmatprep.subr.bf16.mxu0 0
        %869 = vmatpush1.bf16.msra.mxu0 0
        %870 = vmatprep.subr.bf16.mxu0 0
        %871 = vmatpush1.bf16.msra.mxu0 0
        %872 = vmatprep.subr.bf16.mxu0 0
        %873 = vmatpush1.bf16.msra.mxu0 0
        %874 = vmatprep.subr.bf16.mxu0 0
        %875 = vmatpush1.bf16.msra.mxu0 0
        %876 = vmatprep.subr.bf16.mxu0 0
        %877 = vmatpush1.bf16.msra.mxu0 0
        %878 = vmatprep.subr.bf16.mxu0 0
        %879 = vmatpush1.bf16.msra.mxu0 0
        %880 = vmatprep.subr.bf16.mxu0 0
        %881 = vmatpush1.bf16.msra.mxu0 0
        %882 = vmatprep.mubr.bf16.mxu0 0
        %883 = vmatmul.mubr.bf16.gmra.mrb[0].mxu0 %v845
        %v884 = vpop.f32.mrb[0].mxu0
        %v885 = vadd.f32 0.0, %v884
        %v886 = vpop.f32.mrb[0].mxu0
        %v887 = vpop.f32.mrb[0].mxu0
        %v888 = vpop.f32.mrb[0].mxu0
        %889 = vdwg.mxu0
        %v890 = vpack.c.bf16 %v885, %v885
        %v895 = vunpack.c.l.b16 %v653
        %v896 = vunpack.c.l.b16 %v654
        %v897 = vunpack.c.l.b16 %v655
        %v898 = vunpack.c.l.b16 %v656
        %v899 = vpack.c.b16 %v896, %v895
        %v900 = vpack.c.b16 %v898, %v897
        %v904 = vsel %vm665, %v890, 0
        %906 = vmatprep.subr.bf16.mxu0 0
        %907 = vmatpush1.bf16.msra.mxu0 %v899
        %908 = vmatprep.subr.bf16.mxu0 0
        %909 = vmatpush1.bf16.msra.mxu0 %v900
        %910 = vmatprep.subr.bf16.mxu0 0
        %911 = vmatpush1.bf16.msra.mxu0 0
        %912 = vmatprep.subr.bf16.mxu0 0
        %913 = vmatpush1.bf16.msra.mxu0 0
        %914 = vmatprep.subr.bf16.mxu0 0
        %915 = vmatpush1.bf16.msra.mxu0 0
        %916 = vmatprep.subr.bf16.mxu0 0
        %917 = vmatpush1.bf16.msra.mxu0 0
        %918 = vmatprep.subr.bf16.mxu0 0
        %919 = vmatpush1.bf16.msra.mxu0 0
        %920 = vmatprep.subr.bf16.mxu0 0
        %921 = vmatpush1.bf16.msra.mxu0 0
        %922 = vmatprep.subr.bf16.mxu0 0
        %923 = vmatpush1.bf16.msra.mxu0 0
        %924 = vmatprep.subr.bf16.mxu0 0
        %925 = vmatpush1.bf16.msra.mxu0 0
        %926 = vmatprep.subr.bf16.mxu0 0
        %927 = vmatpush1.bf16.msra.mxu0 0
        %928 = vmatprep.subr.bf16.mxu0 0
        %929 = vmatpush1.bf16.msra.mxu0 0
        %930 = vmatprep.subr.bf16.mxu0 0
        %931 = vmatpush1.bf16.msra.mxu0 0
        %932 = vmatprep.subr.bf16.mxu0 0
        %933 = vmatpush1.bf16.msra.mxu0 0
        %934 = vmatprep.subr.bf16.mxu0 0
        %935 = vmatpush1.bf16.msra.mxu0 0
        %936 = vmatprep.subr.bf16.mxu0 0
        %937 = vmatpush1.bf16.msra.mxu0 0
        %938 = vmatprep.mubr.bf16.mxu0 0
        %939 = vmatmul.mubr.bf16.gmra.mrb[0].mxu0 %v904
        %v940 = vpop.f32.mrb[0].mxu0
        %v941 = vadd.f32 0.0, %v940
        %v942 = vpop.f32.mrb[0].mxu0
        %v943 = vpop.f32.mrb[0].mxu0
        %v944 = vpop.f32.mrb[0].mxu0
        %945 = vdwg.mxu0
        %v950 = vunpack.c.l.b16 %v649
        %v951 = vunpack.c.l.b16 %v650
        %v952 = vunpack.c.l.b16 %v651
        %v953 = vunpack.c.l.b16 %v652
        %v954 = vpack.c.b16 %v951, %v950
        %v955 = vpack.c.b16 %v953, %v952
        %v959 = vsel %vm665, %v774, 0
        %961 = vmatprep.subr.bf16.mxu0 0
        %962 = vmatpush1.bf16.msra.mxu0 %v954
        %963 = vmatprep.subr.bf16.mxu0 0
        %964 = vmatpush1.bf16.msra.mxu0 %v955
        %965 = vmatprep.subr.bf16.mxu0 0
        %966 = vmatpush1.bf16.msra.mxu0 0
        %967 = vmatprep.subr.bf16.mxu0 0
        %968 = vmatpush1.bf16.msra.mxu0 0
        %969 = vmatprep.subr.bf16.mxu0 0
        %970 = vmatpush1.bf16.msra.mxu0 0
        %971 = vmatprep.subr.bf16.mxu0 0
        %972 = vmatpush1.bf16.msra.mxu0 0
        %973 = vmatprep.subr.bf16.mxu0 0
        %974 = vmatpush1.bf16.msra.mxu0 0
        %975 = vmatprep.subr.bf16.mxu0 0
        %976 = vmatpush1.bf16.msra.mxu0 0
        %977 = vmatprep.subr.bf16.mxu0 0
        %978 = vmatpush1.bf16.msra.mxu0 0
        %979 = vmatprep.subr.bf16.mxu0 0
        %980 = vmatpush1.bf16.msra.mxu0 0
        %981 = vmatprep.subr.bf16.mxu0 0
        %982 = vmatpush1.bf16.msra.mxu0 0
        %983 = vmatprep.subr.bf16.mxu0 0
        %984 = vmatpush1.bf16.msra.mxu0 0
        %985 = vmatprep.subr.bf16.mxu0 0
        %986 = vmatpush1.bf16.msra.mxu0 0
        %987 = vmatprep.subr.bf16.mxu0 0
        %988 = vmatpush1.bf16.msra.mxu0 0
        %989 = vmatprep.subr.bf16.mxu0 0
        %990 = vmatpush1.bf16.msra.mxu0 0
        %991 = vmatprep.subr.bf16.mxu0 0
        %992 = vmatpush1.bf16.msra.mxu0 0
        %993 = vmatprep.mubr.bf16.mxu0 0
        %994 = vmatmul.mubr.bf16.gmra.mrb[0].mxu0 %v959
        %v995 = vpop.f32.mrb[0].mxu0
        %v996 = vadd.f32 %v941, %v995
        %v997 = vpop.f32.mrb[0].mxu0
        %v998 = vpop.f32.mrb[0].mxu0
        %v999 = vpop.f32.mrb[0].mxu0
        %1000 = vdwg.mxu0
        %1001 = vrot.lane.b32.xlu0 %v640, 64
        %v1002 = vpop.permute.xlu0 %1001
        %1003 = vrot.lane.b32.xlu0 %v641, 64
        %v1004 = vpop.permute.xlu0 %1003
        %v1006 = vsel %vm665, %v1002, 0
        %v1009 = vsel %vm665, %v1004, 0
        %1011 = vmatprep.subr.bf16.mxu0 0
        %1012 = vmatpush1.bf16.xpose.msra.mxu0 %v1009
        %1013 = vmatprep.subr.bf16.mxu0 0
        %1014 = vmatpush1.bf16.xpose.msra.mxu0 0
        %1015 = vmatprep.subr.bf16.mxu0 0
        %1016 = vmatpush1.bf16.xpose.msra.mxu0 0
        %1017 = vmatprep.subr.bf16.mxu0 0
        %1018 = vmatpush1.bf16.xpose.msra.mxu0 0
        %1019 = vmatprep.subr.bf16.mxu0 0
        %1020 = vmatpush1.bf16.xpose.msra.mxu0 0
        %1021 = vmatprep.subr.bf16.mxu0 0
        %1022 = vmatpush1.bf16.xpose.msra.mxu0 0
        %1023 = vmatprep.subr.bf16.mxu0 0
        %1024 = vmatpush1.bf16.xpose.msra.mxu0 0
        %1025 = vmatprep.subr.bf16.mxu0 0
        %1026 = vmatpush1.bf16.xpose.msra.mxu0 0
        %1027 = vmatprep.subr.bf16.mxu0 0
        %1028 = vmatpush1.bf16.xpose.msra.mxu0 0
        %1029 = vmatprep.subr.bf16.mxu0 0
        %1030 = vmatpush1.bf16.xpose.msra.mxu0 0
        %1031 = vmatprep.subr.bf16.mxu0 0
        %1032 = vmatpush1.bf16.xpose.msra.mxu0 0
        %1033 = vmatprep.subr.bf16.mxu0 0
        %1034 = vmatpush1.bf16.xpose.msra.mxu0 0
        %1035 = vmatprep.subr.bf16.mxu0 0
        %1036 = vmatpush1.bf16.xpose.msra.mxu0 0
        %1037 = vmatprep.subr.bf16.mxu0 0
        %1038 = vmatpush1.bf16.xpose.msra.mxu0 0
        %1039 = vmatprep.subr.bf16.mxu0 0
        %1040 = vmatpush1.bf16.xpose.msra.mxu0 0
        %1041 = vmatprep.subr.bf16.mxu0 0
        %1042 = vmatpush1.bf16.xpose.msra.mxu0 0
        %1043 = vmatprep.mubr.bf16.mxu0 0
        %1044 = vmatmul.mubr.bf16.gmra.mrb[0].mxu0 %v1006
        %v1045 = vpop.f32.mrb[0].mxu0
        %v1046 = vadd.f32 0.0, %v1045
        %v1047 = vpop.f32.mrb[0].mxu0
        %v1048 = vpop.f32.mrb[0].mxu0
        %v1049 = vpop.f32.mrb[0].mxu0
        %1050 = vdwg.mxu0
        %v1051 = vmul.f32 %v1046, 0.17677669
        %v1052 = vadd.f32 %v1051, %v648
        %v1053 = vsel %vm714, %v1052, -inf
        %1054 = vmax.xlane.f32.xlu0 %v1053
        %v1055 = vpop.xlane.xlu0 %1054
        %v1056 = vsub.f32 %v1052, %v1055
        %v1057 = vmul.f32 %v1056, 1.442695
        %v1058 = vpow.pop %v1057
        %v1059 = vsel %vm714, %v1058, 0.0
        %1060 = vadd.xlane.f32.xlu0 %v1059
        %v1061 = vpop.xlane.xlu0 %1060
        %v1062 = vrcp.pop %v1061
        %v1063 = vmul.f32 %v1058, %v1062
        %v1064 = vpack.c.bf16 %v1063, %v1063
        %1065 = vrot.lane.b32.xlu0 %v642, 64
        %v1066 = vpop.permute.xlu0 %1065
        %v1068 = vsel %vm714, %v1064, 0
        %v1071 = vsel %vm730, %v1066, 0
        %1073 = vmatprep.subr.bf16.mxu0 0
        %1074 = vmatpush1.bf16.msra.mxu0 %v1071
        %1075 = vmatprep.subr.bf16.mxu0 0
        %1076 = vmatpush1.bf16.msra.mxu0 0
        %1077 = vmatprep.subr.bf16.mxu0 0
        %1078 = vmatpush1.bf16.msra.mxu0 0
        %1079 = vmatprep.subr.bf16.mxu0 0
        %1080 = vmatpush1.bf16.msra.mxu0 0
        %1081 = vmatprep.subr.bf16.mxu0 0
        %1082 = vmatpush1.bf16.msra.mxu0 0
        %1083 = vmatprep.subr.bf16.mxu0 0
        %1084 = vmatpush1.bf16.msra.mxu0 0
        %1085 = vmatprep.subr.bf16.mxu0 0
        %1086 = vmatpush1.bf16.msra.mxu0 0
        %1087 = vmatprep.subr.bf16.mxu0 0
        %1088 = vmatpush1.bf16.msra.mxu0 0
        %1089 = vmatprep.subr.bf16.mxu0 0
        %1090 = vmatpush1.bf16.msra.mxu0 0
        %1091 = vmatprep.subr.bf16.mxu0 0
        %1092 = vmatpush1.bf16.msra.mxu0 0
        %1093 = vmatprep.subr.bf16.mxu0 0
        %1094 = vmatpush1.bf16.msra.mxu0 0
        %1095 = vmatprep.subr.bf16.mxu0 0
        %1096 = vmatpush1.bf16.msra.mxu0 0
        %1097 = vmatprep.subr.bf16.mxu0 0
        %1098 = vmatpush1.bf16.msra.mxu0 0
        %1099 = vmatprep.subr.bf16.mxu0 0
        %1100 = vmatpush1.bf16.msra.mxu0 0
        %1101 = vmatprep.subr.bf16.mxu0 0
        %1102 = vmatpush1.bf16.msra.mxu0 0
        %1103 = vmatprep.subr.bf16.mxu0 0
        %1104 = vmatpush1.bf16.msra.mxu0 0
        %1105 = vmatprep.mubr.bf16.mxu0 0
        %1106 = vmatmul.mubr.bf16.gmra.mrb[0].mxu0 %v1068
        %v1107 = vpop.f32.mrb[0].mxu0
        %v1108 = vadd.f32 0.0, %v1107
        %v1109 = vpop.f32.mrb[0].mxu0
        %v1110 = vpop.f32.mrb[0].mxu0
        %v1111 = vpop.f32.mrb[0].mxu0
        %1112 = vdwg.mxu0
        %v1113 = vpack.c.bf16 %v1108, %v1108
        %v1118 = vunpack.c.l.b16 %v657
        %v1119 = vunpack.c.l.b16 %v658
        %v1120 = vunpack.c.l.b16 %v659
        %v1121 = vunpack.c.l.b16 %v660
        %v1122 = vpack.c.b16 %v1119, %v1118
        %v1123 = vpack.c.b16 %v1121, %v1120
        %v1127 = vsel %vm665, %v1113, 0
        %1129 = vmatprep.subr.bf16.mxu0 0
        %1130 = vmatpush1.bf16.msra.mxu0 %v1122
        %1131 = vmatprep.subr.bf16.mxu0 0
        %1132 = vmatpush1.bf16.msra.mxu0 %v1123
        %1133 = vmatprep.subr.bf16.mxu0 0
        %1134 = vmatpush1.bf16.msra.mxu0 0
        %1135 = vmatprep.subr.bf16.mxu0 0
        %1136 = vmatpush1.bf16.msra.mxu0 0
        %1137 = vmatprep.subr.bf16.mxu0 0
        %1138 = vmatpush1.bf16.msra.mxu0 0
        %1139 = vmatprep.subr.bf16.mxu0 0
        %1140 = vmatpush1.bf16.msra.mxu0 0
        %1141 = vmatprep.subr.bf16.mxu0 0
        %1142 = vmatpush1.bf16.msra.mxu0 0
        %1143 = vmatprep.subr.bf16.mxu0 0
        %1144 = vmatpush1.bf16.msra.mxu0 0
        %1145 = vmatprep.subr.bf16.mxu0 0
        %1146 = vmatpush1.bf16.msra.mxu0 0
        %1147 = vmatprep.subr.bf16.mxu0 0
        %1148 = vmatpush1.bf16.msra.mxu0 0
        %1149 = vmatprep.subr.bf16.mxu0 0
        %1150 = vmatpush1.bf16.msra.mxu0 0
        %1151 = vmatprep.subr.bf16.mxu0 0
        %1152 = vmatpush1.bf16.msra.mxu0 0
        %1153 = vmatprep.subr.bf16.mxu0 0
        %1154 = vmatpush1.bf16.msra.mxu0 0
        %1155 = vmatprep.subr.bf16.mxu0 0
        %1156 = vmatpush1.bf16.msra.mxu0 0
        %1157 = vmatprep.subr.bf16.mxu0 0
        %1158 = vmatpush1.bf16.msra.mxu0 0
        %1159 = vmatprep.subr.bf16.mxu0 0
        %1160 = vmatpush1.bf16.msra.mxu0 0
        %1161 = vmatprep.mubr.bf16.mxu0 0
        %1162 = vmatmul.mubr.bf16.gmra.mrb[0].mxu0 %v1127
        %v1163 = vpop.f32.mrb[0].mxu0
        %v1164 = vadd.f32 0.0, %v1163
        %v1165 = vpop.f32.mrb[0].mxu0
        %v1166 = vpop.f32.mrb[0].mxu0
        %v1167 = vpop.f32.mrb[0].mxu0
        %1168 = vdwg.mxu0
        %v1169 = vadd.f32 %v996, %v1164
        %1170 = vrot.lane.b32.xlu0 %v640, 32
        %v1171 = vpop.permute.xlu0 %1170
        %1172 = vrot.lane.b32.xlu0 %v641, 32
        %v1173 = vpop.permute.xlu0 %1172
        %v1175 = vsel %vm665, %v1171, 0
        %v1178 = vsel %vm665, %v1173, 0
        %1180 = vmatprep.subr.bf16.mxu0 0
        %1181 = vmatpush1.bf16.xpose.msra.mxu0 %v1178
        %1182 = vmatprep.subr.bf16.mxu0 0
        %1183 = vmatpush1.bf16.xpose.msra.mxu0 0
        %1184 = vmatprep.subr.bf16.mxu0 0
        %1185 = vmatpush1.bf16.xpose.msra.mxu0 0
        %1186 = vmatprep.subr.bf16.mxu0 0
        %1187 = vmatpush1.bf16.xpose.msra.mxu0 0
        %1188 = vmatprep.subr.bf16.mxu0 0
        %1189 = vmatpush1.bf16.xpose.msra.mxu0 0
        %1190 = vmatprep.subr.bf16.mxu0 0
        %1191 = vmatpush1.bf16.xpose.msra.mxu0 0
        %1192 = vmatprep.subr.bf16.mxu0 0
        %1193 = vmatpush1.bf16.xpose.msra.mxu0 0
        %1194 = vmatprep.subr.bf16.mxu0 0
        %1195 = vmatpush1.bf16.xpose.msra.mxu0 0
        %1196 = vmatprep.subr.bf16.mxu0 0
        %1197 = vmatpush1.bf16.xpose.msra.mxu0 0
        %1198 = vmatprep.subr.bf16.mxu0 0
        %1199 = vmatpush1.bf16.xpose.msra.mxu0 0
        %1200 = vmatprep.subr.bf16.mxu0 0
        %1201 = vmatpush1.bf16.xpose.msra.mxu0 0
        %1202 = vmatprep.subr.bf16.mxu0 0
        %1203 = vmatpush1.bf16.xpose.msra.mxu0 0
        %1204 = vmatprep.subr.bf16.mxu0 0
        %1205 = vmatpush1.bf16.xpose.msra.mxu0 0
        %1206 = vmatprep.subr.bf16.mxu0 0
        %1207 = vmatpush1.bf16.xpose.msra.mxu0 0
        %1208 = vmatprep.subr.bf16.mxu0 0
        %1209 = vmatpush1.bf16.xpose.msra.mxu0 0
        %1210 = vmatprep.subr.bf16.mxu0 0
        %1211 = vmatpush1.bf16.xpose.msra.mxu0 0
        %1212 = vmatprep.mubr.bf16.mxu0 0
        %1213 = vmatmul.mubr.bf16.gmra.mrb[0].mxu0 %v1175
        %v1214 = vpop.f32.mrb[0].mxu0
        %v1215 = vadd.f32 0.0, %v1214
        %v1216 = vpop.f32.mrb[0].mxu0
        %v1217 = vpop.f32.mrb[0].mxu0
        %v1218 = vpop.f32.mrb[0].mxu0
        %1219 = vdwg.mxu0
        %v1220 = vmul.f32 %v1215, 0.17677669
        %v1221 = vadd.f32 %v1220, %v648
        %v1222 = vsel %vm714, %v1221, -inf
        %1223 = vmax.xlane.f32.xlu0 %v1222
        %v1224 = vpop.xlane.xlu0 %1223
        %v1225 = vsub.f32 %v1221, %v1224
        %v1226 = vmul.f32 %v1225, 1.442695
        %v1227 = vpow.pop %v1226
        %v1228 = vsel %vm714, %v1227, 0.0
        %1229 = vadd.xlane.f32.xlu0 %v1228
        %v1230 = vpop.xlane.xlu0 %1229
        %v1231 = vrcp.pop %v1230
        %v1232 = vmul.f32 %v1227, %v1231
        %v1233 = vpack.c.bf16 %v1232, %v1232
        %1234 = vrot.lane.b32.xlu0 %v642, 32
        %v1235 = vpop.permute.xlu0 %1234
        %v1237 = vsel %vm714, %v1233, 0
        %v1240 = vsel %vm730, %v1235, 0
        %1242 = vmatprep.subr.bf16.mxu0 0
        %1243 = vmatpush1.bf16.msra.mxu0 %v1240
        %1244 = vmatprep.subr.bf16.mxu0 0
        %1245 = vmatpush1.bf16.msra.mxu0 0
        %1246 = vmatprep.subr.bf16.mxu0 0
        %1247 = vmatpush1.bf16.msra.mxu0 0
        %1248 = vmatprep.subr.bf16.mxu0 0
        %1249 = vmatpush1.bf16.msra.mxu0 0
        %1250 = vmatprep.subr.bf16.mxu0 0
        %1251 = vmatpush1.bf16.msra.mxu0 0
        %1252 = vmatprep.subr.bf16.mxu0 0
        %1253 = vmatpush1.bf16.msra.mxu0 0
        %1254 = vmatprep.subr.bf16.mxu0 0
        %1255 = vmatpush1.bf16.msra.mxu0 0
        %1256 = vmatprep.subr.bf16.mxu0 0
        %1257 = vmatpush1.bf16.msra.mxu0 0
        %1258 = vmatprep.subr.bf16.mxu0 0
        %1259 = vmatpush1.bf16.msra.mxu0 0
        %1260 = vmatprep.subr.bf16.mxu0 0
        %1261 = vmatpush1.bf16.msra.mxu0 0
        %1262 = vmatprep.subr.bf16.mxu0 0
        %1263 = vmatpush1.bf16.msra.mxu0 0
        %1264 = vmatprep.subr.bf16.mxu0 0
        %1265 = vmatpush1.bf16.msra.mxu0 0
        %1266 = vmatprep.subr.bf16.mxu0 0
        %1267 = vmatpush1.bf16.msra.mxu0 0
        %1268 = vmatprep.subr.bf16.mxu0 0
        %1269 = vmatpush1.bf16.msra.mxu0 0
        %1270 = vmatprep.subr.bf16.mxu0 0
        %1271 = vmatpush1.bf16.msra.mxu0 0
        %1272 = vmatprep.subr.bf16.mxu0 0
        %1273 = vmatpush1.bf16.msra.mxu0 0
        %1274 = vmatprep.mubr.bf16.mxu0 0
        %1275 = vmatmul.mubr.bf16.gmra.mrb[0].mxu0 %v1237
        %v1276 = vpop.f32.mrb[0].mxu0
        %v1277 = vadd.f32 0.0, %v1276
        %v1278 = vpop.f32.mrb[0].mxu0
        %v1279 = vpop.f32.mrb[0].mxu0
        %v1280 = vpop.f32.mrb[0].mxu0
        %1281 = vdwg.mxu0
        %v1282 = vpack.c.bf16 %v1277, %v1277
        %v1287 = vunpack.c.l.b16 %v661
        %v1288 = vunpack.c.l.b16 %v662
        %v1289 = vunpack.c.l.b16 %v663
        %v1290 = vunpack.c.l.b16 %v664
        %v1291 = vpack.c.b16 %v1288, %v1287
        %v1292 = vpack.c.b16 %v1290, %v1289
        %v1296 = vsel %vm665, %v1282, 0
        %1298 = vmatprep.subr.bf16.mxu0 0
        %1299 = vmatpush1.bf16.msra.mxu0 %v1291
        %1300 = vmatprep.subr.bf16.mxu0 0
        %1301 = vmatpush1.bf16.msra.mxu0 %v1292
        %1302 = vmatprep.subr.bf16.mxu0 0
        %1303 = vmatpush1.bf16.msra.mxu0 0
        %1304 = vmatprep.subr.bf16.mxu0 0
        %1305 = vmatpush1.bf16.msra.mxu0 0
        %1306 = vmatprep.subr.bf16.mxu0 0
        %1307 = vmatpush1.bf16.msra.mxu0 0
        %1308 = vmatprep.subr.bf16.mxu0 0
        %1309 = vmatpush1.bf16.msra.mxu0 0
        %1310 = vmatprep.subr.bf16.mxu0 0
        %1311 = vmatpush1.bf16.msra.mxu0 0
        %1312 = vmatprep.subr.bf16.mxu0 0
        %1313 = vmatpush1.bf16.msra.mxu0 0
        %1314 = vmatprep.subr.bf16.mxu0 0
        %1315 = vmatpush1.bf16.msra.mxu0 0
        %1316 = vmatprep.subr.bf16.mxu0 0
        %1317 = vmatpush1.bf16.msra.mxu0 0
        %1318 = vmatprep.subr.bf16.mxu0 0
        %1319 = vmatpush1.bf16.msra.mxu0 0
        %1320 = vmatprep.subr.bf16.mxu0 0
        %1321 = vmatpush1.bf16.msra.mxu0 0
        %1322 = vmatprep.subr.bf16.mxu0 0
        %1323 = vmatpush1.bf16.msra.mxu0 0
        %1324 = vmatprep.subr.bf16.mxu0 0
        %1325 = vmatpush1.bf16.msra.mxu0 0
        %1326 = vmatprep.subr.bf16.mxu0 0
        %1327 = vmatpush1.bf16.msra.mxu0 0
        %1328 = vmatprep.subr.bf16.mxu0 0
        %1329 = vmatpush1.bf16.msra.mxu0 0
        %1330 = vmatprep.mubr.bf16.mxu0 0
        %1331 = vmatmul.mubr.bf16.gmra.mrb[0].mxu0 %v1296
        %v1332 = vpop.f32.mrb[0].mxu0
        %v1333 = vadd.f32 0.0, %v1332
        %v1334 = vpop.f32.mrb[0].mxu0
        %v1335 = vpop.f32.mrb[0].mxu0
        %v1336 = vpop.f32.mrb[0].mxu0
        %1337 = vdwg.mxu0
        %v1338 = vadd.f32 %v1169, %v1333
        %v1339 = vld [vmem:[%s5] sm:$0x1]
        %v1341 = vlaneseq
        %v1342 = vshrl.u32 %v1341, 7
        %v1343 = vsub.s32 0, %v1342
        %v1344 = vrot.slane %v1339, %v1343
        %v1346 = vadd.f32 %v1338, %v1344
        %1347 = vst [vmem:[%s324] sm:$0xff] %v1346
        %s1348 = sand.u32 %s164, 1
        %s1349 = scalar_lea.sflag [#allocation4], %s1348
        %s1350 = sand.u32 %s164, 1
        %s1351 = smul.addr %s1350, 8
        %s1352 = scalar_lea.vmem [#allocation11], %s1351
        // Predicated region
        $region65: #{tpu_custom_call.1} parent=43 // pred_check
          %p1353 = pneg %p174
        $region66: #{tpu_custom_call.1} parent=43 // pred_check_branch
          %1355 = sbr.rel (%p1353) target = $region68
        $region67: #{tpu_custom_call.1} parent=43 // pred_region
          %s1357 = ssub.s32 128, 128
          %1358 = vsyncadd %s1349, %s1357
          %s1359 = smul.addr %s25, 128
          %s1360 = scalar_lea.hbm %s6, %s1359
          %s1362 = sshll.u32 %s1352, 4
          %s1363 = int_to_ptr.vmem [resolvable:$true] %s1362
          %1365 = dma.vmem_to_hbm [thread:$0]  %s1363, 128, %s1360, %s1349
        $region68: #{tpu_custom_call.1} parent=43 // pred_fallthru
          _
      $region44: #{tpu_custom_call.1} parent=5 // pred_fallthru
        _
      %p1366 = scmp.le.s32.totalorder 2, %s20
      // Predicated region
      $region69: #{tpu_custom_call.1} parent=5 // pred_check
        %p1367 = pneg %p1366
      $region70: #{tpu_custom_call.1} parent=5 // pred_check_branch
        %1369 = sbr.rel (%p1367) target = $region72
      $region71: #{tpu_custom_call.1} parent=5 // pred_region
        %s1370 = ssub.s32 %s20, 2
        // Predicated region
        $region73: #{tpu_custom_call.1} parent=71 // pred_check
          %p1371 = pneg %p180
        $region74: #{tpu_custom_call.1} parent=71 // pred_check_branch
          %1373 = sbr.rel (%p1371) target = $region76
        $region75: #{tpu_custom_call.1} parent=71 // pred_region
          %s1374 = sand.u32 %s165, 1
          %s1375 = scalar_lea.sflag [#allocation4], %s1374
          %s1376 = sand.u32 %s165, 1
          %s1377 = smul.addr %s1376, 8
          %s1378 = scalar_lea.vmem [#allocation11], %s1377
          %1379 = dma.done %s1375, 128
        $region76: #{tpu_custom_call.1} parent=71 // pred_fallthru
          _
      $region72: #{tpu_custom_call.1} parent=5 // pred_fallthru
        _
    $region6: #{tpu_custom_call.1} parent=1 // loop_footer
      %s24 = sadd.s32 1, %s20
    $region7: #{tpu_custom_call.1} parent=1 // loop_footer_branch
      %19 = sbr.rel target = $region3
    $region8: #{tpu_custom_call.1} parent=1 // loop_exit
      _
    %1380 = vsyncpa [#allocation3], 1
    %s1381 = scalar_lea.sflag [#allocation3], 1
    %1382 = vsyncpa %s1381, 1
    %1383 = vsyncpa [#allocation6], 1
    %1384 = vsyncpa [#allocation9], 1
    %1385 = vsyncpa [#allocation4], 1
    %s1386 = scalar_lea.sflag [#allocation4], 1
    %1387 = vsyncpa %s1386, 1

</llo_original>
